<compile_context>
chip_gen: v6e
topology: v6e:2x2x1
jax: 0.10.0
libtpu: 0.0.40
codegen_flags: <defaults>
</compile_context>

<pallas_src>
import jax
import jax.numpy as jnp
from jax import lax
from jax.experimental import pallas as pl
from jax.experimental.pallas import tpu as pltpu


def _round_up(x, m):
    return (x + m - 1) // m * m


# ----------------------------- Pallas kernel ------------------------------ #
def _fused_mlp_kernel(idx_ref, emb_ref, w1_ref, b1_ref, w2_ref, b2_ref,
                      w3_ref, b3_ref, o_ref):
    TB, NF = idx_ref.shape
    V, E = emb_ref.shape

    table = emb_ref[...]                                    # [V, E] bf16 (resident)

    # Fused Feature_Embedding: gather each field's row via a one-hot matmul.
    cols = []
    for f in range(NF):                                     # NF is small & static
        ids = idx_ref[:, f:f + 1]                           # [TB, 1] int32
        onehot = jnp.where(
            ids == lax.broadcasted_iota(jnp.int32, (TB, V), 1), 1.0, 0.0
        ).astype(jnp.bfloat16)                               # [TB, V]
        cols.append(jnp.dot(onehot, table,
                            preferred_element_type=jnp.float32))   # [TB, E] f32
    x = jnp.concatenate(cols, axis=1).astype(jnp.bfloat16)          # [TB, NF*E]

    # hidden layer 1: Linear + ReLU   (bf16 operands, f32 accumulate)
    h = jnp.dot(x, w1_ref[...], preferred_element_type=jnp.float32) + b1_ref[...]
    h = jnp.maximum(h, 0.0).astype(jnp.bfloat16)

    # hidden layer 2: Linear + ReLU
    h = jnp.dot(h, w2_ref[...], preferred_element_type=jnp.float32) + b2_ref[...]
    h = jnp.maximum(h, 0.0)

    # output layer (out_dim == 1): VPU multiply + lane reduction, then sigmoid.
    # w3 is passed pre-transposed as a [1, H2] row.
    z = jnp.sum(h * w3_ref[...], axis=-1, keepdims=True) + b3_ref[...]   # [TB, 1]
    o_ref[...] = jax.nn.sigmoid(z)


# ------------------------------ Pallas wrapper ------------------------------ #
def mlp_forward_pallas(idx, emb_table, w1, b1, w2, b2, w3, b3, *, block_b=512):
    """idx: [B, num_fields] int32 global rows into emb_table -> [B] f32 sigmoid."""
    B, NF = idx.shape
    V, E = emb_table.shape
    F, H1 = w1.shape
    H2, O = w3.shape
    assert O == 1 and F == NF * E

    # Batch tile: a multiple of 8 sublanes, capped by the (rounded-up) batch.
    TB = min(block_b, _round_up(B, 8))
    B_pad = _round_up(B, TB)
    if B_pad != B:
        # Padding rows gather row 0 of the table; their outputs are discarded.
        idx = jnp.pad(idx, ((0, B_pad - B), (0, 0)))

    w3_row = w3.reshape(1, H2).astype(jnp.float32)      # used on the VPU
    b3_s = b3.reshape(1, 1).astype(jnp.float32)

    out = pl.pallas_call(
        _fused_mlp_kernel,
        out_shape=jax.ShapeDtypeStruct((B_pad, 1), jnp.float32),
        grid=(B_pad // TB,),
        in_specs=[
            pl.BlockSpec((TB, NF), lambda i: (i, 0)),   # per-row fused indices
            pl.BlockSpec((V, E), lambda i: (0, 0)),     # embedding table (resident)
            pl.BlockSpec((F, H1), lambda i: (0, 0)),    # w1 (resident)
            pl.BlockSpec((1, H1), lambda i: (0, 0)),    # b1
            pl.BlockSpec((H1, H2), lambda i: (0, 0)),   # w2 (resident)
            pl.BlockSpec((1, H2), lambda i: (0, 0)),    # b2
            pl.BlockSpec((1, H2), lambda i: (0, 0)),    # w3 transposed row
            pl.BlockSpec((1, 1), lambda i: (0, 0)),     # b3
        ],
        out_specs=pl.BlockSpec((TB, 1), lambda i: (i, 0)),
        compiler_params=pltpu.CompilerParams(
            dimension_semantics=("parallel",),
        ),
    )(idx, emb_table, w1, b1, w2, b2, w3_row, b3_s)
    return out[:B, 0]


# --------------------------- Model (glue in JAX) --------------------------- #
def make_params(key, feature_dims, embed_size, hidden_nbs):
    """Deterministic synthetic parameter init (shapes follow the PyTorch module)."""
    total_feats = int(sum(feature_dims))
    num_fields = len(feature_dims)
    features_nb = num_fields * embed_size
    dims = [features_nb] + list(hidden_nbs) + [1]

    keys = jax.random.split(key, 1 + 2 * (len(dims) - 1))
    params = {}

    # Feature_Embedding: one fused table; rows padded to a multiple of 16 so the
    # bf16 VMEM-resident block tiles cleanly (padding rows are never indexed).
    v_pad = _round_up(total_feats, 16)
    table = 0.1 * jax.random.normal(keys[0], (total_feats, embed_size),
                                    dtype=jnp.float32)
    table = jnp.pad(table, ((0, v_pad - total_feats), (0, 0)))
    params["embedding"] = table.astype(jnp.bfloat16)

    # MLP linear layers: hidden-layer weights in bf16 (MXU-native); biases and
    # the tiny final layer stay in f32.
    linears = []
    for li in range(len(dims) - 1):
        kw, kb = keys[1 + 2 * li], keys[2 + 2 * li]
        fan_in = dims[li]
        scale = 1.0 / jnp.sqrt(jnp.float32(fan_in))
        w = scale * jax.random.normal(kw, (dims[li], dims[li + 1]), dtype=jnp.float32)
        b = scale * jax.random.normal(kb, (1, dims[li + 1]), dtype=jnp.float32)
        if li < len(dims) - 2:
            w = w.astype(jnp.bfloat16)
        linears.append((w, b))
    params["linears"] = linears

    # field offsets (standard Feature_Embedding: index into one fused table)
    params["offsets"] = jnp.asarray(
        [0] + list(jnp.cumsum(jnp.asarray(feature_dims[:-1])).tolist()),
        dtype=jnp.int32)
    return params


def my_mlp_forward(params, data, *, block_b=512):
    """data: [B, num_fields] int32 per-field categorical indices -> [B] f32."""
    idx = (data + params["offsets"][None, :]).astype(jnp.int32)   # global row ids
    (w1, b1), (w2, b2), (w3, b3) = params["linears"]
    return mlp_forward_pallas(idx, params["embedding"], w1, b1, w2, b2, w3, b3,
                              block_b=block_b)


def my_mlp_reference(params, data):
    """Pure-JAX reference (same bf16 parameter values, f32 math)."""
    idx = data + params["offsets"][None, :]
    table = params["embedding"].astype(jnp.float32)
    x = jnp.take(table, idx, axis=0).reshape(data.shape[0], -1)
    (w1, b1), (w2, b2), (w3, b3) = params["linears"]
    h = jnp.maximum(x @ w1.astype(jnp.float32) + b1, 0.0)
    h = jnp.maximum(h @ w2.astype(jnp.float32) + b2, 0.0)
    z = h @ w3 + b3
    return jax.nn.sigmoid(z)[:, 0]


# ---------------------------------- main ----------------------------------- #
if __name__ == "__main__":
    # Small, module-consistent config:
    feature_dims = [10, 20, 30, 40]   # 4 categorical fields, fused vocab = 100
    embed_size = 8                    # features_nb = 4 * 8 = 32
    hidden_nbs = [64, 32]
    batch = 200                       # deliberately not a multiple of the tile

    key = jax.random.PRNGKey(0)
    kparam, kdata = jax.random.split(key)
    params = make_params(kparam, feature_dims, embed_size, hidden_nbs)

    # per-field indices within each field's cardinality
    maxes = jnp.asarray(feature_dims, dtype=jnp.int32)
    data = jax.random.randint(kdata, (batch, len(feature_dims)), 0, maxes,
                              dtype=jnp.int32)

    out = my_mlp_forward(params, data, block_b=128)   # grid of 2 batch tiles
    out = jax.block_until_ready(out)

    ref = my_mlp_reference(params, data)
    assert out.shape == (batch,)
    assert jnp.allclose(out, ref, atol=1e-2, rtol=1e-2), \
        float(jnp.max(jnp.abs(out - ref)))

    print("KERNEL_OK")
</pallas_src>

<mosaic_0001>
module attributes {stable_mosaic.version = 11 : i64} {
  func.func @_fused_mlp_kernel(%arg0: i32, %arg1: memref<128x4xi32, #tpu.memory_space<vmem>>, %arg2: memref<112x8xbf16, #tpu.memory_space<vmem>>, %arg3: memref<32x64xbf16, #tpu.memory_space<vmem>>, %arg4: memref<1x64xf32, #tpu.memory_space<vmem>>, %arg5: memref<64x32xbf16, #tpu.memory_space<vmem>>, %arg6: memref<1x32xf32, #tpu.memory_space<vmem>>, %arg7: memref<1x32xf32, #tpu.memory_space<vmem>>, %arg8: memref<1x1xf32, #tpu.memory_space<vmem>>, %arg9: memref<128x1xf32, #tpu.memory_space<vmem>>) attributes {dimension_semantics = [#tpu.dimension_semantics<parallel>], iteration_bounds = array<i64: 2>, scalar_prefetch = 0 : i64, scratch_operands = 0 : i64, tpu.core_type = #tpu.core_type<tc>, window_params = [{transform_indices = @transform_0, window_bounds = array<i64: 128, 4>}, {pipeline_mode = #tpu.pipeline_mode<synchronous>, transform_indices = @transform_1, window_bounds = array<i64: 112, 8>}, {pipeline_mode = #tpu.pipeline_mode<synchronous>, transform_indices = @transform_2, window_bounds = array<i64: 32, 64>}, {pipeline_mode = #tpu.pipeline_mode<synchronous>, transform_indices = @transform_3, window_bounds = array<i64: 1, 64>}, {pipeline_mode = #tpu.pipeline_mode<synchronous>, transform_indices = @transform_4, window_bounds = array<i64: 64, 32>}, {pipeline_mode = #tpu.pipeline_mode<synchronous>, transform_indices = @transform_5, window_bounds = array<i64: 1, 32>}, {pipeline_mode = #tpu.pipeline_mode<synchronous>, transform_indices = @transform_6, window_bounds = array<i64: 1, 32>}, {pipeline_mode = #tpu.pipeline_mode<synchronous>, transform_indices = @transform_7, window_bounds = array<i64: 1, 1>}, {transform_indices = @transform_8, window_bounds = array<i64: 128, 1>}]} {
    %c0 = arith.constant 0 : index
    %c0_0 = arith.constant 0 : index
    %0 = vector.load %arg2[%c0, %c0_0] : memref<112x8xbf16, #tpu.memory_space<vmem>>, vector<112x8xbf16>
    %c0_1 = arith.constant 0 : index
    %c0_2 = arith.constant 0 : index
    %1 = vector.load %arg1[%c0_1, %c0_2] : memref<128x4xi32, #tpu.memory_space<vmem>>, vector<128x1xi32>
    %2 = tpu.iota {dimensions = array<i32: 1>} : vector<128x112xi32>
    %3 = vector.broadcast %1 : vector<128x1xi32> to vector<128x112xi32>
    %4 = arith.cmpi eq, %3, %2 : vector<128x112xi32>
    %cst = arith.constant 1.000000e+00 : f32
    %cst_3 = arith.constant 0.000000e+00 : f32
    %5 = vector.broadcast %cst : f32 to vector<128x112xf32>
    %6 = vector.broadcast %cst_3 : f32 to vector<128x112xf32>
    %7 = arith.select %4, %5, %6 : vector<128x112xi1>, vector<128x112xf32>
    %8 = arith.truncf %7 : vector<128x112xf32> to vector<128x112xbf16>
    %cst_4 = arith.constant dense<0.000000e+00> : vector<128x8xf32>
    %9 = tpu.matmul %8, %0, %cst_4 {dimension_numbers = #tpu.dot_dimension_numbers<[1], [0], [0], [1], [0, 0, 1, 1], [], []>} : vector<128x112xbf16>, vector<112x8xbf16>, vector<128x8xf32> -> vector<128x8xf32>
    %c0_5 = arith.constant 0 : index
    %c1 = arith.constant 1 : index
    %10 = vector.load %arg1[%c0_5, %c1] : memref<128x4xi32, #tpu.memory_space<vmem>>, vector<128x1xi32>
    %11 = tpu.iota {dimensions = array<i32: 1>} : vector<128x112xi32>
    %12 = vector.broadcast %10 : vector<128x1xi32> to vector<128x112xi32>
    %13 = arith.cmpi eq, %12, %11 : vector<128x112xi32>
    %cst_6 = arith.constant 1.000000e+00 : f32
    %cst_7 = arith.constant 0.000000e+00 : f32
    %14 = vector.broadcast %cst_6 : f32 to vector<128x112xf32>
    %15 = vector.broadcast %cst_7 : f32 to vector<128x112xf32>
    %16 = arith.select %13, %14, %15 : vector<128x112xi1>, vector<128x112xf32>
    %17 = arith.truncf %16 : vector<128x112xf32> to vector<128x112xbf16>
    %cst_8 = arith.constant dense<0.000000e+00> : vector<128x8xf32>
    %18 = tpu.matmul %17, %0, %cst_8 {dimension_numbers = #tpu.dot_dimension_numbers<[1], [0], [0], [1], [0, 0, 1, 1], [], []>} : vector<128x112xbf16>, vector<112x8xbf16>, vector<128x8xf32> -> vector<128x8xf32>
    %c0_9 = arith.constant 0 : index
    %c2 = arith.constant 2 : index
    %19 = vector.load %arg1[%c0_9, %c2] : memref<128x4xi32, #tpu.memory_space<vmem>>, vector<128x1xi32>
    %20 = tpu.iota {dimensions = array<i32: 1>} : vector<128x112xi32>
    %21 = vector.broadcast %19 : vector<128x1xi32> to vector<128x112xi32>
    %22 = arith.cmpi eq, %21, %20 : vector<128x112xi32>
    %cst_10 = arith.constant 1.000000e+00 : f32
    %cst_11 = arith.constant 0.000000e+00 : f32
    %23 = vector.broadcast %cst_10 : f32 to vector<128x112xf32>
    %24 = vector.broadcast %cst_11 : f32 to vector<128x112xf32>
    %25 = arith.select %22, %23, %24 : vector<128x112xi1>, vector<128x112xf32>
    %26 = arith.truncf %25 : vector<128x112xf32> to vector<128x112xbf16>
    %cst_12 = arith.constant dense<0.000000e+00> : vector<128x8xf32>
    %27 = tpu.matmul %26, %0, %cst_12 {dimension_numbers = #tpu.dot_dimension_numbers<[1], [0], [0], [1], [0, 0, 1, 1], [], []>} : vector<128x112xbf16>, vector<112x8xbf16>, vector<128x8xf32> -> vector<128x8xf32>
    %c0_13 = arith.constant 0 : index
    %c3 = arith.constant 3 : index
    %28 = vector.load %arg1[%c0_13, %c3] : memref<128x4xi32, #tpu.memory_space<vmem>>, vector<128x1xi32>
    %29 = tpu.iota {dimensions = array<i32: 1>} : vector<128x112xi32>
    %30 = vector.broadcast %28 : vector<128x1xi32> to vector<128x112xi32>
    %31 = arith.cmpi eq, %30, %29 : vector<128x112xi32>
    %cst_14 = arith.constant 1.000000e+00 : f32
    %cst_15 = arith.constant 0.000000e+00 : f32
    %32 = vector.broadcast %cst_14 : f32 to vector<128x112xf32>
    %33 = vector.broadcast %cst_15 : f32 to vector<128x112xf32>
    %34 = arith.select %31, %32, %33 : vector<128x112xi1>, vector<128x112xf32>
    %35 = arith.truncf %34 : vector<128x112xf32> to vector<128x112xbf16>
    %cst_16 = arith.constant dense<0.000000e+00> : vector<128x8xf32>
    %36 = tpu.matmul %35, %0, %cst_16 {dimension_numbers = #tpu.dot_dimension_numbers<[1], [0], [0], [1], [0, 0, 1, 1], [], []>} : vector<128x112xbf16>, vector<112x8xbf16>, vector<128x8xf32> -> vector<128x8xf32>
    %37 = tpu.concatenate %9, %18, %27, %36 in 1 : vector<128x8xf32>, vector<128x8xf32>, vector<128x8xf32>, vector<128x8xf32> -> vector<128x32xf32>
    %38 = arith.truncf %37 : vector<128x32xf32> to vector<128x32xbf16>
    %c0_17 = arith.constant 0 : index
    %c0_18 = arith.constant 0 : index
    %39 = vector.load %arg3[%c0_17, %c0_18] : memref<32x64xbf16, #tpu.memory_space<vmem>>, vector<32x64xbf16>
    %cst_19 = arith.constant dense<0.000000e+00> : vector<128x64xf32>
    %40 = tpu.matmul %38, %39, %cst_19 {dimension_numbers = #tpu.dot_dimension_numbers<[1], [0], [0], [1], [0, 0, 1, 1], [], []>} : vector<128x32xbf16>, vector<32x64xbf16>, vector<128x64xf32> -> vector<128x64xf32>
    %c0_20 = arith.constant 0 : index
    %c0_21 = arith.constant 0 : index
    %41 = vector.load %arg4[%c0_20, %c0_21] : memref<1x64xf32, #tpu.memory_space<vmem>>, vector<1x64xf32>
    %42 = vector.broadcast %41 : vector<1x64xf32> to vector<128x64xf32>
    %43 = arith.addf %40, %42 : vector<128x64xf32>
    %cst_22 = arith.constant 0.000000e+00 : f32
    %44 = vector.broadcast %cst_22 : f32 to vector<128x64xf32>
    %45 = arith.maximumf %43, %44 : vector<128x64xf32>
    %46 = arith.truncf %45 : vector<128x64xf32> to vector<128x64xbf16>
    %c0_23 = arith.constant 0 : index
    %c0_24 = arith.constant 0 : index
    %47 = vector.load %arg5[%c0_23, %c0_24] : memref<64x32xbf16, #tpu.memory_space<vmem>>, vector<64x32xbf16>
    %cst_25 = arith.constant dense<0.000000e+00> : vector<128x32xf32>
    %48 = tpu.matmul %46, %47, %cst_25 {dimension_numbers = #tpu.dot_dimension_numbers<[1], [0], [0], [1], [0, 0, 1, 1], [], []>} : vector<128x64xbf16>, vector<64x32xbf16>, vector<128x32xf32> -> vector<128x32xf32>
    %c0_26 = arith.constant 0 : index
    %c0_27 = arith.constant 0 : index
    %49 = vector.load %arg6[%c0_26, %c0_27] : memref<1x32xf32, #tpu.memory_space<vmem>>, vector<1x32xf32>
    %50 = vector.broadcast %49 : vector<1x32xf32> to vector<128x32xf32>
    %51 = arith.addf %48, %50 : vector<128x32xf32>
    %cst_28 = arith.constant 0.000000e+00 : f32
    %52 = vector.broadcast %cst_28 : f32 to vector<128x32xf32>
    %53 = arith.maximumf %51, %52 : vector<128x32xf32>
    %c0_29 = arith.constant 0 : index
    %c0_30 = arith.constant 0 : index
    %54 = vector.load %arg7[%c0_29, %c0_30] : memref<1x32xf32, #tpu.memory_space<vmem>>, vector<1x32xf32>
    %55 = vector.broadcast %54 : vector<1x32xf32> to vector<128x32xf32>
    %56 = arith.mulf %53, %55 : vector<128x32xf32>
    %cst_31 = arith.constant dense<0.000000e+00> : vector<128xf32>
    %57 = vector.multi_reduction <add>, %56, %cst_31 [1] : vector<128x32xf32> to vector<128xf32>
    %58 = vector.shape_cast %57 : vector<128xf32> to vector<128x1xf32>
    %c0_32 = arith.constant 0 : index
    %c0_33 = arith.constant 0 : index
    %59 = vector.load %arg8[%c0_32, %c0_33] : memref<1x1xf32, #tpu.memory_space<vmem>>, vector<1x1xf32>
    %60 = vector.broadcast %59 : vector<1x1xf32> to vector<128x1xf32>
    %61 = arith.addf %58, %60 : vector<128x1xf32>
    %62 = arith.negf %61 : vector<128x1xf32>
    %63 = math.exp %62 : vector<128x1xf32>
    %cst_34 = arith.constant 1.000000e+00 : f32
    %64 = vector.broadcast %cst_34 : f32 to vector<128x1xf32>
    %65 = arith.addf %64, %63 : vector<128x1xf32>
    %66 = arith.divf %64, %65 : vector<128x1xf32>
    %c0_35 = arith.constant 0 : index
    %c0_36 = arith.constant 0 : index
    %67 = vector.load %arg9[%c0_35, %c0_36] : memref<128x1xf32, #tpu.memory_space<vmem>>, vector<128x1xf32>
    tpu.vector_store %arg9[%c0_35, %c0_36], %66 {strides = array<i32>} : memref<128x1xf32, #tpu.memory_space<vmem>>, vector<128x1xf32>,
    return
  }
  func.func @transform_0(%arg0: i32) -> (i32, i32) {
    %c0_i32 = arith.constant 0 : i32
    %c0_i32_0 = arith.constant 0 : i32
    return %arg0, %c0_i32 : i32, i32
  }
  func.func @transform_1(%arg0: i32) -> (i32, i32) {
    %c0_i32 = arith.constant 0 : i32
    %c0_i32_0 = arith.constant 0 : i32
    %c0_i32_1 = arith.constant 0 : i32
    return %c0_i32, %c0_i32_0 : i32, i32
  }
  func.func @transform_2(%arg0: i32) -> (i32, i32) {
    %c0_i32 = arith.constant 0 : i32
    %c0_i32_0 = arith.constant 0 : i32
    %c0_i32_1 = arith.constant 0 : i32
    return %c0_i32, %c0_i32_0 : i32, i32
  }
  func.func @transform_3(%arg0: i32) -> (i32, i32) {
    %c0_i32 = arith.constant 0 : i32
    %c0_i32_0 = arith.constant 0 : i32
    %c0_i32_1 = arith.constant 0 : i32
    return %c0_i32, %c0_i32_0 : i32, i32
  }
  func.func @transform_4(%arg0: i32) -> (i32, i32) {
    %c0_i32 = arith.constant 0 : i32
    %c0_i32_0 = arith.constant 0 : i32
    %c0_i32_1 = arith.constant 0 : i32
    return %c0_i32, %c0_i32_0 : i32, i32
  }
  func.func @transform_5(%arg0: i32) -> (i32, i32) {
    %c0_i32 = arith.constant 0 : i32
    %c0_i32_0 = arith.constant 0 : i32
    %c0_i32_1 = arith.constant 0 : i32
    return %c0_i32, %c0_i32_0 : i32, i32
  }
  func.func @transform_6(%arg0: i32) -> (i32, i32) {
    %c0_i32 = arith.constant 0 : i32
    %c0_i32_0 = arith.constant 0 : i32
    %c0_i32_1 = arith.constant 0 : i32
    return %c0_i32, %c0_i32_0 : i32, i32
  }
  func.func @transform_7(%arg0: i32) -> (i32, i32) {
    %c0_i32 = arith.constant 0 : i32
    %c0_i32_0 = arith.constant 0 : i32
    %c0_i32_1 = arith.constant 0 : i32
    return %c0_i32, %c0_i32_0 : i32, i32
  }
  func.func @transform_8(%arg0: i32) -> (i32, i32) {
    %c0_i32 = arith.constant 0 : i32
    %c0_i32_0 = arith.constant 0 : i32
    return %arg0, %c0_i32 : i32, i32
  }
}

</mosaic_0001>

<llo_original>
// kernel: tpu_custom_call.1
$region0: #{tpu_custom_call.1}
  #allocation0 [shape = 'u32[]', space=smem, size = 0x4, offset = 0x4, fixed_abs, tag = 'smem constant byte address 0x4 - core index']
  #allocation1 [shape = 'u32[144,128]{1,0:T(1,128)}', space=vmem, size = 0x12000, scoped, tag = 'internal scratch']
  #allocation2 [shape = 'f32[1,1]{1,0:T(1,128)S(1)}', space=vmem, size = 0x200, scoped, tag = 'scoped memory for tpu_custom_call.1']
  %s0 = inlined_call_operand.vmem [shape: s32[256,4], index: 0, kind: input, shape index: {}]
  %s1 = inlined_call_operand.vmem [shape: bf16[112,8], index: 1, kind: input, shape index: {}]
  %s2 = inlined_call_operand.vmem [shape: bf16[32,64], index: 2, kind: input, shape index: {}]
  %s3 = inlined_call_operand.vmem [shape: f32[1,64], index: 3, kind: input, shape index: {}]
  %s4 = inlined_call_operand.vmem [shape: bf16[64,32], index: 4, kind: input, shape index: {}]
  %s5 = inlined_call_operand.vmem [shape: f32[1,32], index: 5, kind: input, shape index: {}]
  %s6 = inlined_call_operand.vmem [shape: f32[1,32], index: 6, kind: input, shape index: {}]
  %s7 = inlined_call_operand.<no memory space> [shape: f32[1,1], index: 7, kind: input, shape index: {}]
  %s8 = inlined_call_operand.vmem [shape: f32[256,1], index: 8, kind: output, shape index: {}]
  %s9 = sld [smem:[#allocation0]]
  $region65: #{tpu_custom_call.1} parent=0
    _
  %s11 = ssub.s32 1, %s9
  %s12 = scalar_select 0, %s11, %s9
  %v13 = vstv %s7
  %14 = vst [vmem:[#allocation2] sm:$0x1] %v13
  loop: start=0, step=1, limit=4
  $region2: #{tpu_custom_call.1} parent=0 // loop_pre_header
    _
  $region3: #{tpu_custom_call.1} parent=0 // loop_header
    %s16 = sphi 0, %s20
    %p17 = scmp.ge.s32.totalorder %s16, 4
    %s26 = sphi 0, %s28
    %s29 = sphi 0, %s26
    %s30 = sphi 0, %s29
    %s46 = sphi 0, %s30
    %s50 = sphi 0, %s50
    %s52 = sphi 0, %s50
    %s53 = sphi 0, %s52
    %s67 = sphi 0, %s53
    %s71 = sphi 0, %s71
    %s73 = sphi 0, %s71
    %s74 = sphi 0, %s73
    %s88 = sphi 0, %s74
    %s92 = sphi 0, %s92
    %s94 = sphi 0, %s92
    %s95 = sphi 0, %s94
    %s109 = sphi 0, %s95
    %s113 = sphi 0, %s113
    %s115 = sphi 0, %s113
    %s116 = sphi 0, %s115
    %s130 = sphi 0, %s116
    %s134 = sphi 0, %s134
    %s136 = sphi 0, %s134
    %s137 = sphi 0, %s136
    %s151 = sphi 0, %s137
    %s155 = sphi 0, %s155
    %s157 = sphi 0, %s155
    %s158 = sphi 0, %s157
    %s172 = sphi 0, %s158
    %s176 = sphi 0, %s176
    %s178 = sphi 0, %s176
    %s179 = sphi 0, %s178
    %s193 = sphi 0, %s179
    %s199 = sphi 0, %s201
    %s202 = sphi 0, %s199
    %s203 = sphi 0, %s202
    %s219 = sphi 0, %s203
  $region4: #{tpu_custom_call.1} parent=0 // loop_header_branch
    %19 = sbr.rel (%p17) target = $region8
  $region5: #{tpu_custom_call.1} parent=0 // loop_body
    %s21 = ssub.s32 %s16, 1
    %s22 = ssub.s32 %s16, 2
    %s23 = sadd.s32 %s16, 1
    %s24 = ssub.s32 %s16, %s23
    %p25 = scmp.eq.s32.totalorder %s24, 0
    %s27 = sadd.s32 %s26, 1
    %s28 = scalar_select %p25, %s26, %s27
    %p31 = pneg %p25
    %p32 = scmp.eq.s32.totalorder %s16, 1
    %p33 = por %p31, %p32
    %p34 = scmp.ne.s32.totalorder %s26, %s29
    %p35 = scmp.eq.s32.totalorder %s16, 0
    %p36 = por %p34, %p35
    %p37 = scmp.ne.s32.totalorder %s26, %s29
    %p38 = scmp.eq.s32.totalorder %s21, 1
    %p39 = por %p37, %p38
    %p40 = scmp.ne.s32.totalorder %s29, %s30
    %p41 = scmp.eq.s32.totalorder %s21, 0
    %p42 = por %p40, %p41
    %p43 = scmp.ne.s32.totalorder %s29, %s30
    %p44 = scmp.eq.s32.totalorder %s22, 1
    %p45 = por %p43, %p44
    %p47 = scmp.ne.s32.totalorder %s30, %s46
    %p48 = scmp.eq.s32.totalorder %s22, 0
    %p49 = por %p47, %p48
    %s51 = sadd.s32 %s50, 1
    %p54 = scmp.eq.s32.totalorder %s16, 1
    %p55 = scmp.ne.s32.totalorder %s50, %s52
    %p56 = scmp.eq.s32.totalorder %s16, 0
    %p57 = por %p55, %p56
    %p58 = scmp.ne.s32.totalorder %s50, %s52
    %p59 = scmp.eq.s32.totalorder %s21, 1
    %p60 = por %p58, %p59
    %p61 = scmp.ne.s32.totalorder %s52, %s53
    %p62 = scmp.eq.s32.totalorder %s21, 0
    %p63 = por %p61, %p62
    %p64 = scmp.ne.s32.totalorder %s52, %s53
    %p65 = scmp.eq.s32.totalorder %s22, 1
    %p66 = por %p64, %p65
    %p68 = scmp.ne.s32.totalorder %s53, %s67
    %p69 = scmp.eq.s32.totalorder %s22, 0
    %p70 = por %p68, %p69
    %s72 = sadd.s32 %s71, 1
    %p75 = scmp.eq.s32.totalorder %s16, 1
    %p76 = scmp.ne.s32.totalorder %s71, %s73
    %p77 = scmp.eq.s32.totalorder %s16, 0
    %p78 = por %p76, %p77
    %p79 = scmp.ne.s32.totalorder %s71, %s73
    %p80 = scmp.eq.s32.totalorder %s21, 1
    %p81 = por %p79, %p80
    %p82 = scmp.ne.s32.totalorder %s73, %s74
    %p83 = scmp.eq.s32.totalorder %s21, 0
    %p84 = por %p82, %p83
    %p85 = scmp.ne.s32.totalorder %s73, %s74
    %p86 = scmp.eq.s32.totalorder %s22, 1
    %p87 = por %p85, %p86
    %p89 = scmp.ne.s32.totalorder %s74, %s88
    %p90 = scmp.eq.s32.totalorder %s22, 0
    %p91 = por %p89, %p90
    %s93 = sadd.s32 %s92, 1
    %p96 = scmp.eq.s32.totalorder %s16, 1
    %p97 = scmp.ne.s32.totalorder %s92, %s94
    %p98 = scmp.eq.s32.totalorder %s16, 0
    %p99 = por %p97, %p98
    %p100 = scmp.ne.s32.totalorder %s92, %s94
    %p101 = scmp.eq.s32.totalorder %s21, 1
    %p102 = por %p100, %p101
    %p103 = scmp.ne.s32.totalorder %s94, %s95
    %p104 = scmp.eq.s32.totalorder %s21, 0
    %p105 = por %p103, %p104
    %p106 = scmp.ne.s32.totalorder %s94, %s95
    %p107 = scmp.eq.s32.totalorder %s22, 1
    %p108 = por %p106, %p107
    %p110 = scmp.ne.s32.totalorder %s95, %s109
    %p111 = scmp.eq.s32.totalorder %s22, 0
    %p112 = por %p110, %p111
    %s114 = sadd.s32 %s113, 1
    %p117 = scmp.eq.s32.totalorder %s16, 1
    %p118 = scmp.ne.s32.totalorder %s113, %s115
    %p119 = scmp.eq.s32.totalorder %s16, 0
    %p120 = por %p118, %p119
    %p121 = scmp.ne.s32.totalorder %s113, %s115
    %p122 = scmp.eq.s32.totalorder %s21, 1
    %p123 = por %p121, %p122
    %p124 = scmp.ne.s32.totalorder %s115, %s116
    %p125 = scmp.eq.s32.totalorder %s21, 0
    %p126 = por %p124, %p125
    %p127 = scmp.ne.s32.totalorder %s115, %s116
    %p128 = scmp.eq.s32.totalorder %s22, 1
    %p129 = por %p127, %p128
    %p131 = scmp.ne.s32.totalorder %s116, %s130
    %p132 = scmp.eq.s32.totalorder %s22, 0
    %p133 = por %p131, %p132
    %s135 = sadd.s32 %s134, 1
    %p138 = scmp.eq.s32.totalorder %s16, 1
    %p139 = scmp.ne.s32.totalorder %s134, %s136
    %p140 = scmp.eq.s32.totalorder %s16, 0
    %p141 = por %p139, %p140
    %p142 = scmp.ne.s32.totalorder %s134, %s136
    %p143 = scmp.eq.s32.totalorder %s21, 1
    %p144 = por %p142, %p143
    %p145 = scmp.ne.s32.totalorder %s136, %s137
    %p146 = scmp.eq.s32.totalorder %s21, 0
    %p147 = por %p145, %p146
    %p148 = scmp.ne.s32.totalorder %s136, %s137
    %p149 = scmp.eq.s32.totalorder %s22, 1
    %p150 = por %p148, %p149
    %p152 = scmp.ne.s32.totalorder %s137, %s151
    %p153 = scmp.eq.s32.totalorder %s22, 0
    %p154 = por %p152, %p153
    %s156 = sadd.s32 %s155, 1
    %p159 = scmp.eq.s32.totalorder %s16, 1
    %p160 = scmp.ne.s32.totalorder %s155, %s157
    %p161 = scmp.eq.s32.totalorder %s16, 0
    %p162 = por %p160, %p161
    %p163 = scmp.ne.s32.totalorder %s155, %s157
    %p164 = scmp.eq.s32.totalorder %s21, 1
    %p165 = por %p163, %p164
    %p166 = scmp.ne.s32.totalorder %s157, %s158
    %p167 = scmp.eq.s32.totalorder %s21, 0
    %p168 = por %p166, %p167
    %p169 = scmp.ne.s32.totalorder %s157, %s158
    %p170 = scmp.eq.s32.totalorder %s22, 1
    %p171 = por %p169, %p170
    %p173 = scmp.ne.s32.totalorder %s158, %s172
    %p174 = scmp.eq.s32.totalorder %s22, 0
    %p175 = por %p173, %p174
    %s177 = sadd.s32 %s176, 1
    %p180 = scmp.eq.s32.totalorder %s16, 1
    %p181 = scmp.ne.s32.totalorder %s176, %s178
    %p182 = scmp.eq.s32.totalorder %s16, 0
    %p183 = por %p181, %p182
    %p184 = scmp.ne.s32.totalorder %s176, %s178
    %p185 = scmp.eq.s32.totalorder %s21, 1
    %p186 = por %p184, %p185
    %p187 = scmp.ne.s32.totalorder %s178, %s179
    %p188 = scmp.eq.s32.totalorder %s21, 0
    %p189 = por %p187, %p188
    %p190 = scmp.ne.s32.totalorder %s178, %s179
    %p191 = scmp.eq.s32.totalorder %s22, 1
    %p192 = por %p190, %p191
    %p194 = scmp.ne.s32.totalorder %s179, %s193
    %p195 = scmp.eq.s32.totalorder %s22, 0
    %p196 = por %p194, %p195
    %s197 = ssub.s32 %s16, %s23
    %p198 = scmp.eq.s32.totalorder %s197, 0
    %s200 = sadd.s32 %s199, 1
    %s201 = scalar_select %p198, %s199, %s200
    %p204 = pneg %p198
    %p205 = scmp.eq.s32.totalorder %s16, 1
    %p206 = por %p204, %p205
    %p207 = scmp.ne.s32.totalorder %s199, %s202
    %p208 = scmp.eq.s32.totalorder %s16, 0
    %p209 = por %p207, %p208
    %p210 = scmp.ne.s32.totalorder %s199, %s202
    %p211 = scmp.eq.s32.totalorder %s21, 1
    %p212 = por %p210, %p211
    %p213 = scmp.ne.s32.totalorder %s202, %s203
    %p214 = scmp.eq.s32.totalorder %s21, 0
    %p215 = por %p213, %p214
    %p216 = scmp.ne.s32.totalorder %s202, %s203
    %p217 = scmp.eq.s32.totalorder %s22, 1
    %p218 = por %p216, %p217
    %p220 = scmp.ne.s32.totalorder %s203, %s219
    %p221 = scmp.eq.s32.totalorder %s22, 0
    %p222 = por %p220, %p221
    %p223 = scmp.le.s32.totalorder 1, %s16
    %p224 = scmp.lt.s32.totalorder %s16, 3
    %p225 = pnand %p223, %p224
    %p226 = pneg %p225
    // Predicated region
    $region9: #{tpu_custom_call.1} parent=5 // pred_check
      _
    $region10: #{tpu_custom_call.1} parent=5 // pred_check_branch
      %228 = sbr.rel (%p225) target = $region12
    $region11: #{tpu_custom_call.1} parent=5 // pred_region
      %s229 = ssub.s32 %s16, 1
      // Predicated region
      $region13: #{tpu_custom_call.1} parent=11 // pred_check
        %p230 = pneg %p63
      $region14: #{tpu_custom_call.1} parent=11 // pred_check_branch
        %232 = sbr.rel (%p230) target = $region16
      $region15: #{tpu_custom_call.1} parent=11 // pred_region
        _
      $region16: #{tpu_custom_call.1} parent=11 // pred_fallthru
        _
      // Predicated region
      $region17: #{tpu_custom_call.1} parent=11 // pred_check
        %p233 = pneg %p84
      $region18: #{tpu_custom_call.1} parent=11 // pred_check_branch
        %235 = sbr.rel (%p233) target = $region20
      $region19: #{tpu_custom_call.1} parent=11 // pred_region
        _
      $region20: #{tpu_custom_call.1} parent=11 // pred_fallthru
        _
      // Predicated region
      $region21: #{tpu_custom_call.1} parent=11 // pred_check
        %p236 = pneg %p105
      $region22: #{tpu_custom_call.1} parent=11 // pred_check_branch
        %238 = sbr.rel (%p236) target = $region24
      $region23: #{tpu_custom_call.1} parent=11 // pred_region
        _
      $region24: #{tpu_custom_call.1} parent=11 // pred_fallthru
        _
      // Predicated region
      $region25: #{tpu_custom_call.1} parent=11 // pred_check
        %p239 = pneg %p126
      $region26: #{tpu_custom_call.1} parent=11 // pred_check_branch
        %241 = sbr.rel (%p239) target = $region28
      $region27: #{tpu_custom_call.1} parent=11 // pred_region
        _
      $region28: #{tpu_custom_call.1} parent=11 // pred_fallthru
        _
      // Predicated region
      $region29: #{tpu_custom_call.1} parent=11 // pred_check
        %p242 = pneg %p147
      $region30: #{tpu_custom_call.1} parent=11 // pred_check_branch
        %244 = sbr.rel (%p242) target = $region32
      $region31: #{tpu_custom_call.1} parent=11 // pred_region
        _
      $region32: #{tpu_custom_call.1} parent=11 // pred_fallthru
        _
      // Predicated region
      $region33: #{tpu_custom_call.1} parent=11 // pred_check
        %p245 = pneg %p168
      $region34: #{tpu_custom_call.1} parent=11 // pred_check_branch
        %247 = sbr.rel (%p245) target = $region36
      $region35: #{tpu_custom_call.1} parent=11 // pred_region
        _
      $region36: #{tpu_custom_call.1} parent=11 // pred_fallthru
        _
      // Predicated region
      $region37: #{tpu_custom_call.1} parent=11 // pred_check
        %p248 = pneg %p189
      $region38: #{tpu_custom_call.1} parent=11 // pred_check_branch
        %250 = sbr.rel (%p248) target = $region40
      $region39: #{tpu_custom_call.1} parent=11 // pred_region
        _
      $region40: #{tpu_custom_call.1} parent=11 // pred_fallthru
        _
    $region12: #{tpu_custom_call.1} parent=5 // pred_fallthru
      _
    %p251 = scmp.lt.s32.totalorder %s16, 2
    // Predicated region
    $region41: #{tpu_custom_call.1} parent=5 // pred_check
      %p252 = pneg %p251
    $region42: #{tpu_custom_call.1} parent=5 // pred_check_branch
      %254 = sbr.rel (%p252) target = $region44
    $region43: #{tpu_custom_call.1} parent=5 // pred_region
      // Predicated region
      $region45: #{tpu_custom_call.1} parent=43 // pred_check
        %p255 = pneg %p36
      $region46: #{tpu_custom_call.1} parent=43 // pred_check_branch
        %257 = sbr.rel (%p255) target = $region48
      $region47: #{tpu_custom_call.1} parent=43 // pred_region
        %s258 = smul.u32 16, %s16
        %p259 = scmp.lt.s32.totalorder %s258, 31
        %s260 = scalar_select %p259, %s258, 31
        %s261 = smul.addr %s260, 8
        %s262 = scalar_lea.vmem %s0, %s261
        %s263 = smul.u32 16, %s16
      $region48: #{tpu_custom_call.1} parent=43 // pred_fallthru
        _
    $region44: #{tpu_custom_call.1} parent=5 // pred_fallthru
      _
    %p264 = scmp.le.s32.totalorder 1, %s16
    %p265 = scmp.lt.s32.totalorder %s16, 3
    %p266 = pnand %p264, %p265
    %p267 = pneg %p266
    // Predicated region
    $region49: #{tpu_custom_call.1} parent=5 // pred_check
      _
    $region50: #{tpu_custom_call.1} parent=5 // pred_check_branch
      %269 = sbr.rel (%p266) target = $region52
    $region51: #{tpu_custom_call.1} parent=5 // pred_region
      %s270 = ssub.s32 %s16, 1
      %s271 = smul.u32 16, %s21
      %p272 = scmp.lt.s32.totalorder %s271, 31
      %s273 = scalar_select %p272, %s271, 31
      %s274 = smul.addr %s273, 8
      %s275 = scalar_lea.vmem %s0, %s274
      %p276 = pneg %p42
      %p277 = pneg %p39
      %p278 = pneg %p63
      %p279 = pneg %p60
      %p280 = pneg %p84
      %p281 = pneg %p81
      %p282 = pneg %p105
      %p283 = pneg %p102
      %p284 = pneg %p126
      %p285 = pneg %p123
      %p286 = pneg %p147
      %p287 = pneg %p144
      %p288 = pneg %p168
      %p289 = pneg %p165
      %p290 = pneg %p189
      %p291 = pneg %p186
      %p292 = pneg %p215
      %p293 = pneg %p212
      %s294 = smul.u32 16, %s21
      %p295 = scmp.lt.s32.totalorder %s294, 31
      %s296 = scalar_select %p295, %s294, 31
      %s297 = smul.addr %s296, 8
      %s298 = scalar_lea.vmem %s8, %s297
      %s299 = smul.u32 16, %s21
      %p300 = scmp.lt.s32.totalorder %s299, 31
      %s301 = scalar_select %p300, %s299, 31
      %s302 = smul.addr %s301, 8
      %s303 = scalar_lea.vmem %s0, %s302
      %s304 = smul.u32 16, %s21
      %s305 = smul.u32 16, %s21
      %p306 = scmp.lt.s32.totalorder %s305, 31
      %s307 = scalar_select %p306, %s305, 31
      %s308 = smul.addr %s307, 8
      %s309 = scalar_lea.vmem %s8, %s308
      %s310 = smul.u32 16, %s21
      %v312 = vld [vmem:[%s1] sm:$0xf]
      %v313 = vld [vmem:[%s1 + $0x4] sm:$0xf]
      %v314 = vld [vmem:[%s1 + $0x8] sm:$0xf]
      %v315 = vld [vmem:[%s1 + $0xc] sm:$0xf]
      %v316 = vld [vmem:[%s1 + $0x10] sm:$0xf]
      %v317 = vld [vmem:[%s1 + $0x14] sm:$0xf]
      %v318 = vld [vmem:[%s1 + $0x18] sm:$0xf]
      %v319 = vld [vmem:[%s1 + $0x1c] sm:$0xf]
      %v320 = vld [vmem:[%s1 + $0x20] sm:$0xf]
      %v321 = vld [vmem:[%s1 + $0x24] sm:$0xf]
      %v322 = vld [vmem:[%s1 + $0x28] sm:$0xf]
      %v323 = vld [vmem:[%s1 + $0x2c] sm:$0xf]
      %v324 = vld [vmem:[%s1 + $0x30] sm:$0xf]
      %v325 = vld [vmem:[%s1 + $0x34] sm:$0xf]
      %v326 = vld [vmem:[%s303] sm:$0xff]
      %v327 = vld [vmem:[%s303 + $0x8] sm:$0xff]
      %v328 = vld [vmem:[%s303 + $0x10] sm:$0xff]
      %v329 = vld [vmem:[%s303 + $0x18] sm:$0xff]
      %v330 = vld [vmem:[%s303 + $0x20] sm:$0xff]
      %v331 = vld [vmem:[%s303 + $0x28] sm:$0xff]
      %v332 = vld [vmem:[%s303 + $0x30] sm:$0xff]
      %v333 = vld [vmem:[%s303 + $0x38] sm:$0xff]
      %v334 = vld [vmem:[%s303 + $0x40] sm:$0xff]
      %v335 = vld [vmem:[%s303 + $0x48] sm:$0xff]
      %v336 = vld [vmem:[%s303 + $0x50] sm:$0xff]
      %v337 = vld [vmem:[%s303 + $0x58] sm:$0xff]
      %v338 = vld [vmem:[%s303 + $0x60] sm:$0xff]
      %v339 = vld [vmem:[%s303 + $0x68] sm:$0xff]
      %v340 = vld [vmem:[%s303 + $0x70] sm:$0xff]
      %v341 = vld [vmem:[%s303 + $0x78] sm:$0xff]
      %v342 = vlaneseq
      %v343 = vand.u32 %v342, 127
      %344 = vset.pattern.permute.xlu0 0
      %345 = vperm.xlu0 %344, %v326
      %v346 = vpop.permute.xlu0 %345
      %347 = vset.pattern.permute.xlu0 0
      %348 = vperm.xlu0 %347, %v327
      %v349 = vpop.permute.xlu0 %348
      %350 = vset.pattern.permute.xlu0 0
      %351 = vperm.xlu0 %350, %v328
      %v352 = vpop.permute.xlu0 %351
      %353 = vset.pattern.permute.xlu0 0
      %354 = vperm.xlu0 %353, %v329
      %v355 = vpop.permute.xlu0 %354
      %356 = vset.pattern.permute.xlu0 0
      %357 = vperm.xlu0 %356, %v330
      %v358 = vpop.permute.xlu0 %357
      %359 = vset.pattern.permute.xlu0 0
      %360 = vperm.xlu0 %359, %v331
      %v361 = vpop.permute.xlu0 %360
      %362 = vset.pattern.permute.xlu0 0
      %363 = vperm.xlu0 %362, %v332
      %v364 = vpop.permute.xlu0 %363
      %365 = vset.pattern.permute.xlu0 0
      %366 = vperm.xlu0 %365, %v333
      %v367 = vpop.permute.xlu0 %366
      %368 = vset.pattern.permute.xlu0 0
      %369 = vperm.xlu0 %368, %v334
      %v370 = vpop.permute.xlu0 %369
      %371 = vset.pattern.permute.xlu0 0
      %372 = vperm.xlu0 %371, %v335
      %v373 = vpop.permute.xlu0 %372
      %374 = vset.pattern.permute.xlu0 0
      %375 = vperm.xlu0 %374, %v336
      %v376 = vpop.permute.xlu0 %375
      %377 = vset.pattern.permute.xlu0 0
      %378 = vperm.xlu0 %377, %v337
      %v379 = vpop.permute.xlu0 %378
      %380 = vset.pattern.permute.xlu0 0
      %381 = vperm.xlu0 %380, %v338
      %v382 = vpop.permute.xlu0 %381
      %383 = vset.pattern.permute.xlu0 0
      %384 = vperm.xlu0 %383, %v339
      %v385 = vpop.permute.xlu0 %384
      %386 = vset.pattern.permute.xlu0 0
      %387 = vperm.xlu0 %386, %v340
      %v388 = vpop.permute.xlu0 %387
      %389 = vset.pattern.permute.xlu0 0
      %390 = vperm.xlu0 %389, %v341
      %v391 = vpop.permute.xlu0 %390
      %vm392 = vcmp.eq.s32.totalorder %v346, %v343
      %vm393 = vcmp.eq.s32.totalorder %v349, %v343
      %vm394 = vcmp.eq.s32.totalorder %v352, %v343
      %vm395 = vcmp.eq.s32.totalorder %v355, %v343
      %vm396 = vcmp.eq.s32.totalorder %v358, %v343
      %vm397 = vcmp.eq.s32.totalorder %v361, %v343
      %vm398 = vcmp.eq.s32.totalorder %v364, %v343
      %vm399 = vcmp.eq.s32.totalorder %v367, %v343
      %vm400 = vcmp.eq.s32.totalorder %v370, %v343
      %vm401 = vcmp.eq.s32.totalorder %v373, %v343
      %vm402 = vcmp.eq.s32.totalorder %v376, %v343
      %vm403 = vcmp.eq.s32.totalorder %v379, %v343
      %vm404 = vcmp.eq.s32.totalorder %v382, %v343
      %vm405 = vcmp.eq.s32.totalorder %v385, %v343
      %vm406 = vcmp.eq.s32.totalorder %v388, %v343
      %vm407 = vcmp.eq.s32.totalorder %v391, %v343
      %v408 = vsel %vm392, 1.0, 0.0
      %v409 = vsel %vm393, 1.0, 0.0
      %v410 = vsel %vm394, 1.0, 0.0
      %v411 = vsel %vm395, 1.0, 0.0
      %v412 = vsel %vm396, 1.0, 0.0
      %v413 = vsel %vm397, 1.0, 0.0
      %v414 = vsel %vm398, 1.0, 0.0
      %v415 = vsel %vm399, 1.0, 0.0
      %v416 = vsel %vm400, 1.0, 0.0
      %v417 = vsel %vm401, 1.0, 0.0
      %v418 = vsel %vm402, 1.0, 0.0
      %v419 = vsel %vm403, 1.0, 0.0
      %v420 = vsel %vm404, 1.0, 0.0
      %v421 = vsel %vm405, 1.0, 0.0
      %v422 = vsel %vm406, 1.0, 0.0
      %v423 = vsel %vm407, 1.0, 0.0
      %v424 = vpack.c.bf16 %v409, %v408
      %v425 = vpack.c.bf16 %v411, %v410
      %v426 = vpack.c.bf16 %v413, %v412
      %v427 = vpack.c.bf16 %v415, %v414
      %v428 = vpack.c.bf16 %v417, %v416
      %v429 = vpack.c.bf16 %v419, %v418
      %v430 = vpack.c.bf16 %v421, %v420
      %v431 = vpack.c.bf16 %v423, %v422
      %v446 = vunpack.c.l.b16 %v312
      %v447 = vunpack.c.l.b16 %v313
      %v448 = vunpack.c.l.b16 %v314
      %v449 = vunpack.c.l.b16 %v315
      %v450 = vunpack.c.l.b16 %v316
      %v451 = vunpack.c.l.b16 %v317
      %v452 = vunpack.c.l.b16 %v318
      %v453 = vunpack.c.l.b16 %v319
      %v454 = vunpack.c.l.b16 %v320
      %v455 = vunpack.c.l.b16 %v321
      %v456 = vunpack.c.l.b16 %v322
      %v457 = vunpack.c.l.b16 %v323
      %v458 = vunpack.c.l.b16 %v324
      %v459 = vunpack.c.l.b16 %v325
      %v460 = vpack.c.b16 %v447, %v446
      %v461 = vpack.c.b16 %v449, %v448
      %v462 = vpack.c.b16 %v451, %v450
      %v463 = vpack.c.b16 %v453, %v452
      %v464 = vpack.c.b16 %v455, %v454
      %v465 = vpack.c.b16 %v457, %v456
      %v466 = vpack.c.b16 %v459, %v458
      %vm474 = vcmask 916480
      %v476 = vsel %vm474, %v424, 0
      %v479 = vsel %vm474, %v425, 0
      %v482 = vsel %vm474, %v426, 0
      %v485 = vsel %vm474, %v427, 0
      %v488 = vsel %vm474, %v428, 0
      %v491 = vsel %vm474, %v429, 0
      %v494 = vsel %vm474, %v430, 0
      %v497 = vsel %vm474, %v431, 0
      %499 = vmatprep.subr.bf16.mxu0 0
      %500 = vmatpush1.bf16.msra.mxu0 0
      %501 = vmatprep.subr.bf16.mxu0 0
      %502 = vmatpush1.bf16.msra.mxu0 %v466
      %503 = vmatprep.subr.bf16.mxu0 0
      %504 = vmatpush1.bf16.msra.mxu0 %v465
      %505 = vmatprep.subr.bf16.mxu0 0
      %506 = vmatpush1.bf16.msra.mxu0 %v464
      %507 = vmatprep.subr.bf16.mxu0 0
      %508 = vmatpush1.bf16.msra.mxu0 %v463
      %509 = vmatprep.subr.bf16.mxu0 0
      %510 = vmatpush1.bf16.msra.mxu0 %v462
      %511 = vmatprep.subr.bf16.mxu0 0
      %512 = vmatpush1.bf16.msra.mxu0 %v461
      %513 = vmatprep.subr.bf16.mxu0 0
      %514 = vmatpush1.bf16.msra.mxu0 %v460
      %515 = vmatprep.subr.bf16.mxu0 0
      %516 = vmatpush2.bf16.msra.mxu0 0
      %517 = vmatprep.subr.bf16.mxu0 0
      %518 = vmatpush2.bf16.msra.mxu0 0
      %519 = vmatprep.subr.bf16.mxu0 0
      %520 = vmatpush2.bf16.msra.mxu0 0
      %521 = vmatprep.subr.bf16.mxu0 0
      %522 = vmatpush2.bf16.msra.mxu0 0
      %523 = vmatprep.subr.bf16.mxu0 0
      %524 = vmatpush2.bf16.msra.mxu0 0
      %525 = vmatprep.subr.bf16.mxu0 0
      %526 = vmatpush2.bf16.msra.mxu0 0
      %527 = vmatprep.subr.bf16.mxu0 0
      %528 = vmatpush2.bf16.msra.mxu0 0
      %529 = vmatprep.subr.bf16.mxu0 0
      %530 = vmatpush2.bf16.msra.mxu0 0
      %531 = vmatprep.mubr.bf16.mxu0 0
      %532 = vmatmul.mubr.bf16.gmra.mxu0 %v476
      %v533 = vpop.f32.mrf.mxu0
      %v534 = vadd.f32 0.0, %v533
      %v535 = vpop.f32.mrf.mxu0
      %v536 = vpop.f32.mrf.mxu0
      %v537 = vadd.f32 0.0, %v536
      %v538 = vpop.f32.mrf.mxu0
      %539 = vmatprep.mubr.bf16.mxu0 0
      %540 = vmatmul.mubr.bf16.gmra.mxu0 %v479
      %v541 = vpop.f32.mrf.mxu0
      %v542 = vadd.f32 0.0, %v541
      %v543 = vpop.f32.mrf.mxu0
      %v544 = vpop.f32.mrf.mxu0
      %v545 = vadd.f32 0.0, %v544
      %v546 = vpop.f32.mrf.mxu0
      %547 = vmatprep.mubr.bf16.mxu0 0
      %548 = vmatmul.mubr.bf16.gmra.mxu0 %v482
      %v549 = vpop.f32.mrf.mxu0
      %v550 = vadd.f32 0.0, %v549
      %v551 = vpop.f32.mrf.mxu0
      %v552 = vpop.f32.mrf.mxu0
      %v553 = vadd.f32 0.0, %v552
      %v554 = vpop.f32.mrf.mxu0
      %555 = vmatprep.mubr.bf16.mxu0 0
      %556 = vmatmul.mubr.bf16.gmra.mxu0 %v485
      %v557 = vpop.f32.mrf.mxu0
      %v558 = vadd.f32 0.0, %v557
      %v559 = vpop.f32.mrf.mxu0
      %v560 = vpop.f32.mrf.mxu0
      %v561 = vadd.f32 0.0, %v560
      %v562 = vpop.f32.mrf.mxu0
      %563 = vmatprep.mubr.bf16.mxu0 0
      %564 = vmatmul.mubr.bf16.gmra.mxu0 %v488
      %v565 = vpop.f32.mrf.mxu0
      %v566 = vadd.f32 0.0, %v565
      %v567 = vpop.f32.mrf.mxu0
      %v568 = vpop.f32.mrf.mxu0
      %v569 = vadd.f32 0.0, %v568
      %v570 = vpop.f32.mrf.mxu0
      %571 = vmatprep.mubr.bf16.mxu0 0
      %572 = vmatmul.mubr.bf16.gmra.mxu0 %v491
      %v573 = vpop.f32.mrf.mxu0
      %v574 = vadd.f32 0.0, %v573
      %v575 = vpop.f32.mrf.mxu0
      %v576 = vpop.f32.mrf.mxu0
      %v577 = vadd.f32 0.0, %v576
      %v578 = vpop.f32.mrf.mxu0
      %579 = vmatprep.mubr.bf16.mxu0 0
      %580 = vmatmul.mubr.bf16.gmra.mxu0 %v494
      %v581 = vpop.f32.mrf.mxu0
      %v582 = vadd.f32 0.0, %v581
      %v583 = vpop.f32.mrf.mxu0
      %v584 = vpop.f32.mrf.mxu0
      %v585 = vadd.f32 0.0, %v584
      %v586 = vpop.f32.mrf.mxu0
      %587 = vmatprep.mubr.bf16.mxu0 0
      %588 = vmatmul.mubr.bf16.gmra.mxu0 %v497
      %v589 = vpop.f32.mrf.mxu0
      %v590 = vadd.f32 0.0, %v589
      %v591 = vpop.f32.mrf.mxu0
      %v592 = vpop.f32.mrf.mxu0
      %v593 = vadd.f32 0.0, %v592
      %v594 = vpop.f32.mrf.mxu0
      %595 = vdwg.mxu0
      %596 = vset.pattern.permute.xlu0 1
      %597 = vperm.xlu0 %596, %v326
      %v598 = vpop.permute.xlu0 %597
      %599 = vset.pattern.permute.xlu0 1
      %600 = vperm.xlu0 %599, %v327
      %v601 = vpop.permute.xlu0 %600
      %602 = vset.pattern.permute.xlu0 1
      %603 = vperm.xlu0 %602, %v328
      %v604 = vpop.permute.xlu0 %603
      %605 = vset.pattern.permute.xlu0 1
      %606 = vperm.xlu0 %605, %v329
      %v607 = vpop.permute.xlu0 %606
      %608 = vset.pattern.permute.xlu0 1
      %609 = vperm.xlu0 %608, %v330
      %v610 = vpop.permute.xlu0 %609
      %611 = vset.pattern.permute.xlu0 1
      %612 = vperm.xlu0 %611, %v331
      %v613 = vpop.permute.xlu0 %612
      %614 = vset.pattern.permute.xlu0 1
      %615 = vperm.xlu0 %614, %v332
      %v616 = vpop.permute.xlu0 %615
      %617 = vset.pattern.permute.xlu0 1
      %618 = vperm.xlu0 %617, %v333
      %v619 = vpop.permute.xlu0 %618
      %620 = vset.pattern.permute.xlu0 1
      %621 = vperm.xlu0 %620, %v334
      %v622 = vpop.permute.xlu0 %621
      %623 = vset.pattern.permute.xlu0 1
      %624 = vperm.xlu0 %623, %v335
      %v625 = vpop.permute.xlu0 %624
      %626 = vset.pattern.permute.xlu0 1
      %627 = vperm.xlu0 %626, %v336
      %v628 = vpop.permute.xlu0 %627
      %629 = vset.pattern.permute.xlu0 1
      %630 = vperm.xlu0 %629, %v337
      %v631 = vpop.permute.xlu0 %630
      %632 = vset.pattern.permute.xlu0 1
      %633 = vperm.xlu0 %632, %v338
      %v634 = vpop.permute.xlu0 %633
      %635 = vset.pattern.permute.xlu0 1
      %636 = vperm.xlu0 %635, %v339
      %v637 = vpop.permute.xlu0 %636
      %638 = vset.pattern.permute.xlu0 1
      %639 = vperm.xlu0 %638, %v340
      %v640 = vpop.permute.xlu0 %639
      %641 = vset.pattern.permute.xlu0 1
      %642 = vperm.xlu0 %641, %v341
      %v643 = vpop.permute.xlu0 %642
      %vm644 = vcmp.eq.s32.totalorder %v598, %v343
      %vm645 = vcmp.eq.s32.totalorder %v601, %v343
      %vm646 = vcmp.eq.s32.totalorder %v604, %v343
      %vm647 = vcmp.eq.s32.totalorder %v607, %v343
      %vm648 = vcmp.eq.s32.totalorder %v610, %v343
      %vm649 = vcmp.eq.s32.totalorder %v613, %v343
      %vm650 = vcmp.eq.s32.totalorder %v616, %v343
      %vm651 = vcmp.eq.s32.totalorder %v619, %v343
      %vm652 = vcmp.eq.s32.totalorder %v622, %v343
      %vm653 = vcmp.eq.s32.totalorder %v625, %v343
      %vm654 = vcmp.eq.s32.totalorder %v628, %v343
      %vm655 = vcmp.eq.s32.totalorder %v631, %v343
      %vm656 = vcmp.eq.s32.totalorder %v634, %v343
      %vm657 = vcmp.eq.s32.totalorder %v637, %v343
      %vm658 = vcmp.eq.s32.totalorder %v640, %v343
      %vm659 = vcmp.eq.s32.totalorder %v643, %v343
      %v660 = vsel %vm644, 1.0, 0.0
      %v661 = vsel %vm645, 1.0, 0.0
      %v662 = vsel %vm646, 1.0, 0.0
      %v663 = vsel %vm647, 1.0, 0.0
      %v664 = vsel %vm648, 1.0, 0.0
      %v665 = vsel %vm649, 1.0, 0.0
      %v666 = vsel %vm650, 1.0, 0.0
      %v667 = vsel %vm651, 1.0, 0.0
      %v668 = vsel %vm652, 1.0, 0.0
      %v669 = vsel %vm653, 1.0, 0.0
      %v670 = vsel %vm654, 1.0, 0.0
      %v671 = vsel %vm655, 1.0, 0.0
      %v672 = vsel %vm656, 1.0, 0.0
      %v673 = vsel %vm657, 1.0, 0.0
      %v674 = vsel %vm658, 1.0, 0.0
      %v675 = vsel %vm659, 1.0, 0.0
      %v676 = vpack.c.bf16 %v661, %v660
      %v677 = vpack.c.bf16 %v663, %v662
      %v678 = vpack.c.bf16 %v665, %v664
      %v679 = vpack.c.bf16 %v667, %v666
      %v680 = vpack.c.bf16 %v669, %v668
      %v681 = vpack.c.bf16 %v671, %v670
      %v682 = vpack.c.bf16 %v673, %v672
      %v683 = vpack.c.bf16 %v675, %v674
      %v685 = vsel %vm474, %v676, 0
      %v688 = vsel %vm474, %v677, 0
      %v691 = vsel %vm474, %v678, 0
      %v694 = vsel %vm474, %v679, 0
      %v697 = vsel %vm474, %v680, 0
      %v700 = vsel %vm474, %v681, 0
      %v703 = vsel %vm474, %v682, 0
      %v706 = vsel %vm474, %v683, 0
      %708 = vmatprep.subr.bf16.mxu0 0
      %709 = vmatpush1.bf16.msra.mxu0 0
      %710 = vmatprep.subr.bf16.mxu0 0
      %711 = vmatpush1.bf16.msra.mxu0 %v466
      %712 = vmatprep.subr.bf16.mxu0 0
      %713 = vmatpush1.bf16.msra.mxu0 %v465
      %714 = vmatprep.subr.bf16.mxu0 0
      %715 = vmatpush1.bf16.msra.mxu0 %v464
      %716 = vmatprep.subr.bf16.mxu0 0
      %717 = vmatpush1.bf16.msra.mxu0 %v463
      %718 = vmatprep.subr.bf16.mxu0 0
      %719 = vmatpush1.bf16.msra.mxu0 %v462
      %720 = vmatprep.subr.bf16.mxu0 0
      %721 = vmatpush1.bf16.msra.mxu0 %v461
      %722 = vmatprep.subr.bf16.mxu0 0
      %723 = vmatpush1.bf16.msra.mxu0 %v460
      %724 = vmatprep.subr.bf16.mxu0 0
      %725 = vmatpush2.bf16.msra.mxu0 0
      %726 = vmatprep.subr.bf16.mxu0 0
      %727 = vmatpush2.bf16.msra.mxu0 0
      %728 = vmatprep.subr.bf16.mxu0 0
      %729 = vmatpush2.bf16.msra.mxu0 0
      %730 = vmatprep.subr.bf16.mxu0 0
      %731 = vmatpush2.bf16.msra.mxu0 0
      %732 = vmatprep.subr.bf16.mxu0 0
      %733 = vmatpush2.bf16.msra.mxu0 0
      %734 = vmatprep.subr.bf16.mxu0 0
      %735 = vmatpush2.bf16.msra.mxu0 0
      %736 = vmatprep.subr.bf16.mxu0 0
      %737 = vmatpush2.bf16.msra.mxu0 0
      %738 = vmatprep.subr.bf16.mxu0 0
      %739 = vmatpush2.bf16.msra.mxu0 0
      %740 = vmatprep.mubr.bf16.mxu0 0
      %741 = vmatmul.mubr.bf16.gmra.mxu0 %v685
      %v742 = vpop.f32.mrf.mxu0
      %v743 = vadd.f32 0.0, %v742
      %v744 = vpop.f32.mrf.mxu0
      %v745 = vpop.f32.mrf.mxu0
      %v746 = vadd.f32 0.0, %v745
      %v747 = vpop.f32.mrf.mxu0
      %748 = vmatprep.mubr.bf16.mxu0 0
      %749 = vmatmul.mubr.bf16.gmra.mxu0 %v688
      %v750 = vpop.f32.mrf.mxu0
      %v751 = vadd.f32 0.0, %v750
      %v752 = vpop.f32.mrf.mxu0
      %v753 = vpop.f32.mrf.mxu0
      %v754 = vadd.f32 0.0, %v753
      %v755 = vpop.f32.mrf.mxu0
      %756 = vmatprep.mubr.bf16.mxu0 0
      %757 = vmatmul.mubr.bf16.gmra.mxu0 %v691
      %v758 = vpop.f32.mrf.mxu0
      %v759 = vadd.f32 0.0, %v758
      %v760 = vpop.f32.mrf.mxu0
      %v761 = vpop.f32.mrf.mxu0
      %v762 = vadd.f32 0.0, %v761
      %v763 = vpop.f32.mrf.mxu0
      %764 = vmatprep.mubr.bf16.mxu0 0
      %765 = vmatmul.mubr.bf16.gmra.mxu0 %v694
      %v766 = vpop.f32.mrf.mxu0
      %v767 = vadd.f32 0.0, %v766
      %v768 = vpop.f32.mrf.mxu0
      %v769 = vpop.f32.mrf.mxu0
      %v770 = vadd.f32 0.0, %v769
      %v771 = vpop.f32.mrf.mxu0
      %772 = vmatprep.mubr.bf16.mxu0 0
      %773 = vmatmul.mubr.bf16.gmra.mxu0 %v697
      %v774 = vpop.f32.mrf.mxu0
      %v775 = vadd.f32 0.0, %v774
      %v776 = vpop.f32.mrf.mxu0
      %v777 = vpop.f32.mrf.mxu0
      %v778 = vadd.f32 0.0, %v777
      %v779 = vpop.f32.mrf.mxu0
      %780 = vmatprep.mubr.bf16.mxu0 0
      %781 = vmatmul.mubr.bf16.gmra.mxu0 %v700
      %v782 = vpop.f32.mrf.mxu0
      %v783 = vadd.f32 0.0, %v782
      %v784 = vpop.f32.mrf.mxu0
      %v785 = vpop.f32.mrf.mxu0
      %v786 = vadd.f32 0.0, %v785
      %v787 = vpop.f32.mrf.mxu0
      %788 = vmatprep.mubr.bf16.mxu0 0
      %789 = vmatmul.mubr.bf16.gmra.mxu0 %v703
      %v790 = vpop.f32.mrf.mxu0
      %v791 = vadd.f32 0.0, %v790
      %v792 = vpop.f32.mrf.mxu0
      %v793 = vpop.f32.mrf.mxu0
      %v794 = vadd.f32 0.0, %v793
      %v795 = vpop.f32.mrf.mxu0
      %796 = vmatprep.mubr.bf16.mxu0 0
      %797 = vmatmul.mubr.bf16.gmra.mxu0 %v706
      %v798 = vpop.f32.mrf.mxu0
      %v799 = vadd.f32 0.0, %v798
      %v800 = vpop.f32.mrf.mxu0
      %v801 = vpop.f32.mrf.mxu0
      %v802 = vadd.f32 0.0, %v801
      %v803 = vpop.f32.mrf.mxu0
      %804 = vdwg.mxu0
      %805 = vset.pattern.permute.xlu0 2
      %806 = vperm.xlu0 %805, %v326
      %v807 = vpop.permute.xlu0 %806
      %808 = vset.pattern.permute.xlu0 2
      %809 = vperm.xlu0 %808, %v327
      %v810 = vpop.permute.xlu0 %809
      %811 = vset.pattern.permute.xlu0 2
      %812 = vperm.xlu0 %811, %v328
      %v813 = vpop.permute.xlu0 %812
      %814 = vset.pattern.permute.xlu0 2
      %815 = vperm.xlu0 %814, %v329
      %v816 = vpop.permute.xlu0 %815
      %817 = vset.pattern.permute.xlu0 2
      %818 = vperm.xlu0 %817, %v330
      %v819 = vpop.permute.xlu0 %818
      %820 = vset.pattern.permute.xlu0 2
      %821 = vperm.xlu0 %820, %v331
      %v822 = vpop.permute.xlu0 %821
      %823 = vset.pattern.permute.xlu0 2
      %824 = vperm.xlu0 %823, %v332
      %v825 = vpop.permute.xlu0 %824
      %826 = vset.pattern.permute.xlu0 2
      %827 = vperm.xlu0 %826, %v333
      %v828 = vpop.permute.xlu0 %827
      %829 = vset.pattern.permute.xlu0 2
      %830 = vperm.xlu0 %829, %v334
      %v831 = vpop.permute.xlu0 %830
      %832 = vset.pattern.permute.xlu0 2
      %833 = vperm.xlu0 %832, %v335
      %v834 = vpop.permute.xlu0 %833
      %835 = vset.pattern.permute.xlu0 2
      %836 = vperm.xlu0 %835, %v336
      %v837 = vpop.permute.xlu0 %836
      %838 = vset.pattern.permute.xlu0 2
      %839 = vperm.xlu0 %838, %v337
      %v840 = vpop.permute.xlu0 %839
      %841 = vset.pattern.permute.xlu0 2
      %842 = vperm.xlu0 %841, %v338
      %v843 = vpop.permute.xlu0 %842
      %844 = vset.pattern.permute.xlu0 2
      %845 = vperm.xlu0 %844, %v339
      %v846 = vpop.permute.xlu0 %845
      %847 = vset.pattern.permute.xlu0 2
      %848 = vperm.xlu0 %847, %v340
      %v849 = vpop.permute.xlu0 %848
      %850 = vset.pattern.permute.xlu0 2
      %851 = vperm.xlu0 %850, %v341
      %v852 = vpop.permute.xlu0 %851
      %vm853 = vcmp.eq.s32.totalorder %v807, %v343
      %vm854 = vcmp.eq.s32.totalorder %v810, %v343
      %vm855 = vcmp.eq.s32.totalorder %v813, %v343
      %vm856 = vcmp.eq.s32.totalorder %v816, %v343
      %vm857 = vcmp.eq.s32.totalorder %v819, %v343
      %vm858 = vcmp.eq.s32.totalorder %v822, %v343
      %vm859 = vcmp.eq.s32.totalorder %v825, %v343
      %vm860 = vcmp.eq.s32.totalorder %v828, %v343
      %vm861 = vcmp.eq.s32.totalorder %v831, %v343
      %vm862 = vcmp.eq.s32.totalorder %v834, %v343
      %vm863 = vcmp.eq.s32.totalorder %v837, %v343
      %vm864 = vcmp.eq.s32.totalorder %v840, %v343
      %vm865 = vcmp.eq.s32.totalorder %v843, %v343
      %vm866 = vcmp.eq.s32.totalorder %v846, %v343
      %vm867 = vcmp.eq.s32.totalorder %v849, %v343
      %vm868 = vcmp.eq.s32.totalorder %v852, %v343
      %v869 = vsel %vm853, 1.0, 0.0
      %v870 = vsel %vm854, 1.0, 0.0
      %v871 = vsel %vm855, 1.0, 0.0
      %v872 = vsel %vm856, 1.0, 0.0
      %v873 = vsel %vm857, 1.0, 0.0
      %v874 = vsel %vm858, 1.0, 0.0
      %v875 = vsel %vm859, 1.0, 0.0
      %v876 = vsel %vm860, 1.0, 0.0
      %v877 = vsel %vm861, 1.0, 0.0
      %v878 = vsel %vm862, 1.0, 0.0
      %v879 = vsel %vm863, 1.0, 0.0
      %v880 = vsel %vm864, 1.0, 0.0
      %v881 = vsel %vm865, 1.0, 0.0
      %v882 = vsel %vm866, 1.0, 0.0
      %v883 = vsel %vm867, 1.0, 0.0
      %v884 = vsel %vm868, 1.0, 0.0
      %v885 = vpack.c.bf16 %v870, %v869
      %v886 = vpack.c.bf16 %v872, %v871
      %v887 = vpack.c.bf16 %v874, %v873
      %v888 = vpack.c.bf16 %v876, %v875
      %v889 = vpack.c.bf16 %v878, %v877
      %v890 = vpack.c.bf16 %v880, %v879
      %v891 = vpack.c.bf16 %v882, %v881
      %v892 = vpack.c.bf16 %v884, %v883
      %v894 = vsel %vm474, %v885, 0
      %v897 = vsel %vm474, %v886, 0
      %v900 = vsel %vm474, %v887, 0
      %v903 = vsel %vm474, %v888, 0
      %v906 = vsel %vm474, %v889, 0
      %v909 = vsel %vm474, %v890, 0
      %v912 = vsel %vm474, %v891, 0
      %v915 = vsel %vm474, %v892, 0
      %917 = vmatprep.subr.bf16.mxu0 0
      %918 = vmatpush1.bf16.msra.mxu0 0
      %919 = vmatprep.subr.bf16.mxu0 0
      %920 = vmatpush1.bf16.msra.mxu0 %v466
      %921 = vmatprep.subr.bf16.mxu0 0
      %922 = vmatpush1.bf16.msra.mxu0 %v465
      %923 = vmatprep.subr.bf16.mxu0 0
      %924 = vmatpush1.bf16.msra.mxu0 %v464
      %925 = vmatprep.subr.bf16.mxu0 0
      %926 = vmatpush1.bf16.msra.mxu0 %v463
      %927 = vmatprep.subr.bf16.mxu0 0
      %928 = vmatpush1.bf16.msra.mxu0 %v462
      %929 = vmatprep.subr.bf16.mxu0 0
      %930 = vmatpush1.bf16.msra.mxu0 %v461
      %931 = vmatprep.subr.bf16.mxu0 0
      %932 = vmatpush1.bf16.msra.mxu0 %v460
      %933 = vmatprep.subr.bf16.mxu0 0
      %934 = vmatpush2.bf16.msra.mxu0 0
      %935 = vmatprep.subr.bf16.mxu0 0
      %936 = vmatpush2.bf16.msra.mxu0 0
      %937 = vmatprep.subr.bf16.mxu0 0
      %938 = vmatpush2.bf16.msra.mxu0 0
      %939 = vmatprep.subr.bf16.mxu0 0
      %940 = vmatpush2.bf16.msra.mxu0 0
      %941 = vmatprep.subr.bf16.mxu0 0
      %942 = vmatpush2.bf16.msra.mxu0 0
      %943 = vmatprep.subr.bf16.mxu0 0
      %944 = vmatpush2.bf16.msra.mxu0 0
      %945 = vmatprep.subr.bf16.mxu0 0
      %946 = vmatpush2.bf16.msra.mxu0 0
      %947 = vmatprep.subr.bf16.mxu0 0
      %948 = vmatpush2.bf16.msra.mxu0 0
      %949 = vmatprep.mubr.bf16.mxu0 0
      %950 = vmatmul.mubr.bf16.gmra.mxu0 %v894
      %v951 = vpop.f32.mrf.mxu0
      %v952 = vadd.f32 0.0, %v951
      %v953 = vpop.f32.mrf.mxu0
      %v954 = vpop.f32.mrf.mxu0
      %v955 = vadd.f32 0.0, %v954
      %v956 = vpop.f32.mrf.mxu0
      %957 = vmatprep.mubr.bf16.mxu0 0
      %958 = vmatmul.mubr.bf16.gmra.mxu0 %v897
      %v959 = vpop.f32.mrf.mxu0
      %v960 = vadd.f32 0.0, %v959
      %v961 = vpop.f32.mrf.mxu0
      %v962 = vpop.f32.mrf.mxu0
      %v963 = vadd.f32 0.0, %v962
      %v964 = vpop.f32.mrf.mxu0
      %965 = vmatprep.mubr.bf16.mxu0 0
      %966 = vmatmul.mubr.bf16.gmra.mxu0 %v900
      %v967 = vpop.f32.mrf.mxu0
      %v968 = vadd.f32 0.0, %v967
      %v969 = vpop.f32.mrf.mxu0
      %v970 = vpop.f32.mrf.mxu0
      %v971 = vadd.f32 0.0, %v970
      %v972 = vpop.f32.mrf.mxu0
      %973 = vmatprep.mubr.bf16.mxu0 0
      %974 = vmatmul.mubr.bf16.gmra.mxu0 %v903
      %v975 = vpop.f32.mrf.mxu0
      %v976 = vadd.f32 0.0, %v975
      %v977 = vpop.f32.mrf.mxu0
      %v978 = vpop.f32.mrf.mxu0
      %v979 = vadd.f32 0.0, %v978
      %v980 = vpop.f32.mrf.mxu0
      %981 = vmatprep.mubr.bf16.mxu0 0
      %982 = vmatmul.mubr.bf16.gmra.mxu0 %v906
      %v983 = vpop.f32.mrf.mxu0
      %v984 = vadd.f32 0.0, %v983
      %v985 = vpop.f32.mrf.mxu0
      %v986 = vpop.f32.mrf.mxu0
      %v987 = vadd.f32 0.0, %v986
      %v988 = vpop.f32.mrf.mxu0
      %989 = vmatprep.mubr.bf16.mxu0 0
      %990 = vmatmul.mubr.bf16.gmra.mxu0 %v909
      %v991 = vpop.f32.mrf.mxu0
      %v992 = vadd.f32 0.0, %v991
      %v993 = vpop.f32.mrf.mxu0
      %v994 = vpop.f32.mrf.mxu0
      %v995 = vadd.f32 0.0, %v994
      %v996 = vpop.f32.mrf.mxu0
      %997 = vmatprep.mubr.bf16.mxu0 0
      %998 = vmatmul.mubr.bf16.gmra.mxu0 %v912
      %v999 = vpop.f32.mrf.mxu0
      %v1000 = vadd.f32 0.0, %v999
      %v1001 = vpop.f32.mrf.mxu0
      %v1002 = vpop.f32.mrf.mxu0
      %v1003 = vadd.f32 0.0, %v1002
      %v1004 = vpop.f32.mrf.mxu0
      %1005 = vmatprep.mubr.bf16.mxu0 0
      %1006 = vmatmul.mubr.bf16.gmra.mxu0 %v915
      %v1007 = vpop.f32.mrf.mxu0
      %v1008 = vadd.f32 0.0, %v1007
      %v1009 = vpop.f32.mrf.mxu0
      %v1010 = vpop.f32.mrf.mxu0
      %v1011 = vadd.f32 0.0, %v1010
      %v1012 = vpop.f32.mrf.mxu0
      %1013 = vdwg.mxu0
      %1014 = vset.pattern.permute.xlu0 3
      %1015 = vperm.xlu0 %1014, %v326
      %v1016 = vpop.permute.xlu0 %1015
      %1017 = vset.pattern.permute.xlu0 3
      %1018 = vperm.xlu0 %1017, %v327
      %v1019 = vpop.permute.xlu0 %1018
      %1020 = vset.pattern.permute.xlu0 3
      %1021 = vperm.xlu0 %1020, %v328
      %v1022 = vpop.permute.xlu0 %1021
      %1023 = vset.pattern.permute.xlu0 3
      %1024 = vperm.xlu0 %1023, %v329
      %v1025 = vpop.permute.xlu0 %1024
      %1026 = vset.pattern.permute.xlu0 3
      %1027 = vperm.xlu0 %1026, %v330
      %v1028 = vpop.permute.xlu0 %1027
      %1029 = vset.pattern.permute.xlu0 3
      %1030 = vperm.xlu0 %1029, %v331
      %v1031 = vpop.permute.xlu0 %1030
      %1032 = vset.pattern.permute.xlu0 3
      %1033 = vperm.xlu0 %1032, %v332
      %v1034 = vpop.permute.xlu0 %1033
      %1035 = vset.pattern.permute.xlu0 3
      %1036 = vperm.xlu0 %1035, %v333
      %v1037 = vpop.permute.xlu0 %1036
      %1038 = vset.pattern.permute.xlu0 3
      %1039 = vperm.xlu0 %1038, %v334
      %v1040 = vpop.permute.xlu0 %1039
      %1041 = vset.pattern.permute.xlu0 3
      %1042 = vperm.xlu0 %1041, %v335
      %v1043 = vpop.permute.xlu0 %1042
      %1044 = vset.pattern.permute.xlu0 3
      %1045 = vperm.xlu0 %1044, %v336
      %v1046 = vpop.permute.xlu0 %1045
      %1047 = vset.pattern.permute.xlu0 3
      %1048 = vperm.xlu0 %1047, %v337
      %v1049 = vpop.permute.xlu0 %1048
      %1050 = vset.pattern.permute.xlu0 3
      %1051 = vperm.xlu0 %1050, %v338
      %v1052 = vpop.permute.xlu0 %1051
      %1053 = vset.pattern.permute.xlu0 3
      %1054 = vperm.xlu0 %1053, %v339
      %v1055 = vpop.permute.xlu0 %1054
      %1056 = vset.pattern.permute.xlu0 3
      %1057 = vperm.xlu0 %1056, %v340
      %v1058 = vpop.permute.xlu0 %1057
      %1059 = vset.pattern.permute.xlu0 3
      %1060 = vperm.xlu0 %1059, %v341
      %v1061 = vpop.permute.xlu0 %1060
      %vm1062 = vcmp.eq.s32.totalorder %v1016, %v343
      %vm1063 = vcmp.eq.s32.totalorder %v1019, %v343
      %vm1064 = vcmp.eq.s32.totalorder %v1022, %v343
      %vm1065 = vcmp.eq.s32.totalorder %v1025, %v343
      %vm1066 = vcmp.eq.s32.totalorder %v1028, %v343
      %vm1067 = vcmp.eq.s32.totalorder %v1031, %v343
      %vm1068 = vcmp.eq.s32.totalorder %v1034, %v343
      %vm1069 = vcmp.eq.s32.totalorder %v1037, %v343
      %vm1070 = vcmp.eq.s32.totalorder %v1040, %v343
      %vm1071 = vcmp.eq.s32.totalorder %v1043, %v343
      %vm1072 = vcmp.eq.s32.totalorder %v1046, %v343
      %vm1073 = vcmp.eq.s32.totalorder %v1049, %v343
      %vm1074 = vcmp.eq.s32.totalorder %v1052, %v343
      %vm1075 = vcmp.eq.s32.totalorder %v1055, %v343
      %vm1076 = vcmp.eq.s32.totalorder %v1058, %v343
      %vm1077 = vcmp.eq.s32.totalorder %v1061, %v343
      %v1078 = vsel %vm1062, 1.0, 0.0
      %v1079 = vsel %vm1063, 1.0, 0.0
      %v1080 = vsel %vm1064, 1.0, 0.0
      %v1081 = vsel %vm1065, 1.0, 0.0
      %v1082 = vsel %vm1066, 1.0, 0.0
      %v1083 = vsel %vm1067, 1.0, 0.0
      %v1084 = vsel %vm1068, 1.0, 0.0
      %v1085 = vsel %vm1069, 1.0, 0.0
      %v1086 = vsel %vm1070, 1.0, 0.0
      %v1087 = vsel %vm1071, 1.0, 0.0
      %v1088 = vsel %vm1072, 1.0, 0.0
      %v1089 = vsel %vm1073, 1.0, 0.0
      %v1090 = vsel %vm1074, 1.0, 0.0
      %v1091 = vsel %vm1075, 1.0, 0.0
      %v1092 = vsel %vm1076, 1.0, 0.0
      %v1093 = vsel %vm1077, 1.0, 0.0
      %v1094 = vpack.c.bf16 %v1079, %v1078
      %v1095 = vpack.c.bf16 %v1081, %v1080
      %v1096 = vpack.c.bf16 %v1083, %v1082
      %v1097 = vpack.c.bf16 %v1085, %v1084
      %v1098 = vpack.c.bf16 %v1087, %v1086
      %v1099 = vpack.c.bf16 %v1089, %v1088
      %v1100 = vpack.c.bf16 %v1091, %v1090
      %v1101 = vpack.c.bf16 %v1093, %v1092
      %v1103 = vsel %vm474, %v1094, 0
      %v1106 = vsel %vm474, %v1095, 0
      %v1109 = vsel %vm474, %v1096, 0
      %v1112 = vsel %vm474, %v1097, 0
      %v1115 = vsel %vm474, %v1098, 0
      %v1118 = vsel %vm474, %v1099, 0
      %v1121 = vsel %vm474, %v1100, 0
      %v1124 = vsel %vm474, %v1101, 0
      %1126 = vmatprep.subr.bf16.mxu0 0
      %1127 = vmatpush1.bf16.msra.mxu0 0
      %1128 = vmatprep.subr.bf16.mxu0 0
      %1129 = vmatpush1.bf16.msra.mxu0 %v466
      %1130 = vmatprep.subr.bf16.mxu0 0
      %1131 = vmatpush1.bf16.msra.mxu0 %v465
      %1132 = vmatprep.subr.bf16.mxu0 0
      %1133 = vmatpush1.bf16.msra.mxu0 %v464
      %1134 = vmatprep.subr.bf16.mxu0 0
      %1135 = vmatpush1.bf16.msra.mxu0 %v463
      %1136 = vmatprep.subr.bf16.mxu0 0
      %1137 = vmatpush1.bf16.msra.mxu0 %v462
      %1138 = vmatprep.subr.bf16.mxu0 0
      %1139 = vmatpush1.bf16.msra.mxu0 %v461
      %1140 = vmatprep.subr.bf16.mxu0 0
      %1141 = vmatpush1.bf16.msra.mxu0 %v460
      %1142 = vmatprep.subr.bf16.mxu0 0
      %1143 = vmatpush2.bf16.msra.mxu0 0
      %1144 = vmatprep.subr.bf16.mxu0 0
      %1145 = vmatpush2.bf16.msra.mxu0 0
      %1146 = vmatprep.subr.bf16.mxu0 0
      %1147 = vmatpush2.bf16.msra.mxu0 0
      %1148 = vmatprep.subr.bf16.mxu0 0
      %1149 = vmatpush2.bf16.msra.mxu0 0
      %1150 = vmatprep.subr.bf16.mxu0 0
      %1151 = vmatpush2.bf16.msra.mxu0 0
      %1152 = vmatprep.subr.bf16.mxu0 0
      %1153 = vmatpush2.bf16.msra.mxu0 0
      %1154 = vmatprep.subr.bf16.mxu0 0
      %1155 = vmatpush2.bf16.msra.mxu0 0
      %1156 = vmatprep.subr.bf16.mxu0 0
      %1157 = vmatpush2.bf16.msra.mxu0 0
      %1158 = vmatprep.mubr.bf16.mxu0 0
      %1159 = vmatmul.mubr.bf16.gmra.mxu0 %v1103
      %v1160 = vpop.f32.mrf.mxu0
      %v1161 = vadd.f32 0.0, %v1160
      %v1162 = vpop.f32.mrf.mxu0
      %v1163 = vpop.f32.mrf.mxu0
      %v1164 = vadd.f32 0.0, %v1163
      %v1165 = vpop.f32.mrf.mxu0
      %1166 = vmatprep.mubr.bf16.mxu0 0
      %1167 = vmatmul.mubr.bf16.gmra.mxu0 %v1106
      %v1168 = vpop.f32.mrf.mxu0
      %v1169 = vadd.f32 0.0, %v1168
      %v1170 = vpop.f32.mrf.mxu0
      %v1171 = vpop.f32.mrf.mxu0
      %v1172 = vadd.f32 0.0, %v1171
      %v1173 = vpop.f32.mrf.mxu0
      %1174 = vmatprep.mubr.bf16.mxu0 0
      %1175 = vmatmul.mubr.bf16.gmra.mxu0 %v1109
      %v1176 = vpop.f32.mrf.mxu0
      %v1177 = vadd.f32 0.0, %v1176
      %v1178 = vpop.f32.mrf.mxu0
      %v1179 = vpop.f32.mrf.mxu0
      %v1180 = vadd.f32 0.0, %v1179
      %v1181 = vpop.f32.mrf.mxu0
      %1182 = vmatprep.mubr.bf16.mxu0 0
      %1183 = vmatmul.mubr.bf16.gmra.mxu0 %v1112
      %v1184 = vpop.f32.mrf.mxu0
      %v1185 = vadd.f32 0.0, %v1184
      %v1186 = vpop.f32.mrf.mxu0
      %v1187 = vpop.f32.mrf.mxu0
      %v1188 = vadd.f32 0.0, %v1187
      %v1189 = vpop.f32.mrf.mxu0
      %1190 = vmatprep.mubr.bf16.mxu0 0
      %1191 = vmatmul.mubr.bf16.gmra.mxu0 %v1115
      %v1192 = vpop.f32.mrf.mxu0
      %v1193 = vadd.f32 0.0, %v1192
      %v1194 = vpop.f32.mrf.mxu0
      %v1195 = vpop.f32.mrf.mxu0
      %v1196 = vadd.f32 0.0, %v1195
      %v1197 = vpop.f32.mrf.mxu0
      %1198 = vmatprep.mubr.bf16.mxu0 0
      %1199 = vmatmul.mubr.bf16.gmra.mxu0 %v1118
      %v1200 = vpop.f32.mrf.mxu0
      %v1201 = vadd.f32 0.0, %v1200
      %v1202 = vpop.f32.mrf.mxu0
      %v1203 = vpop.f32.mrf.mxu0
      %v1204 = vadd.f32 0.0, %v1203
      %v1205 = vpop.f32.mrf.mxu0
      %1206 = vmatprep.mubr.bf16.mxu0 0
      %1207 = vmatmul.mubr.bf16.gmra.mxu0 %v1121
      %v1208 = vpop.f32.mrf.mxu0
      %v1209 = vadd.f32 0.0, %v1208
      %v1210 = vpop.f32.mrf.mxu0
      %v1211 = vpop.f32.mrf.mxu0
      %v1212 = vadd.f32 0.0, %v1211
      %v1213 = vpop.f32.mrf.mxu0
      %1214 = vmatprep.mubr.bf16.mxu0 0
      %1215 = vmatmul.mubr.bf16.gmra.mxu0 %v1124
      %v1216 = vpop.f32.mrf.mxu0
      %v1217 = vadd.f32 0.0, %v1216
      %v1218 = vpop.f32.mrf.mxu0
      %v1219 = vpop.f32.mrf.mxu0
      %v1220 = vadd.f32 0.0, %v1219
      %v1221 = vpop.f32.mrf.mxu0
      %1222 = vdwg.mxu0
      %1239 = vrot.lane.b32.xlu0 %v743, 8
      %v1240 = vpop.permute.xlu0 %1239
      %1241 = vrot.lane.b32.xlu0 %v746, 8
      %v1242 = vpop.permute.xlu0 %1241
      %1243 = vrot.lane.b32.xlu0 %v751, 8
      %v1244 = vpop.permute.xlu0 %1243
      %1245 = vrot.lane.b32.xlu0 %v754, 8
      %v1246 = vpop.permute.xlu0 %1245
      %1247 = vrot.lane.b32.xlu0 %v759, 8
      %v1248 = vpop.permute.xlu0 %1247
      %1249 = vrot.lane.b32.xlu0 %v762, 8
      %v1250 = vpop.permute.xlu0 %1249
      %1251 = vrot.lane.b32.xlu0 %v767, 8
      %v1252 = vpop.permute.xlu0 %1251
      %1253 = vrot.lane.b32.xlu0 %v770, 8
      %v1254 = vpop.permute.xlu0 %1253
      %1255 = vrot.lane.b32.xlu0 %v775, 8
      %v1256 = vpop.permute.xlu0 %1255
      %1257 = vrot.lane.b32.xlu0 %v778, 8
      %v1258 = vpop.permute.xlu0 %1257
      %1259 = vrot.lane.b32.xlu0 %v783, 8
      %v1260 = vpop.permute.xlu0 %1259
      %1261 = vrot.lane.b32.xlu0 %v786, 8
      %v1262 = vpop.permute.xlu0 %1261
      %1263 = vrot.lane.b32.xlu0 %v791, 8
      %v1264 = vpop.permute.xlu0 %1263
      %1265 = vrot.lane.b32.xlu0 %v794, 8
      %v1266 = vpop.permute.xlu0 %1265
      %1267 = vrot.lane.b32.xlu0 %v799, 8
      %v1268 = vpop.permute.xlu0 %1267
      %1269 = vrot.lane.b32.xlu0 %v802, 8
      %v1270 = vpop.permute.xlu0 %1269
      %1303 = vrot.lane.b32.xlu0 %v952, 16
      %v1304 = vpop.permute.xlu0 %1303
      %1305 = vrot.lane.b32.xlu0 %v955, 16
      %v1306 = vpop.permute.xlu0 %1305
      %1307 = vrot.lane.b32.xlu0 %v960, 16
      %v1308 = vpop.permute.xlu0 %1307
      %1309 = vrot.lane.b32.xlu0 %v963, 16
      %v1310 = vpop.permute.xlu0 %1309
      %1311 = vrot.lane.b32.xlu0 %v968, 16
      %v1312 = vpop.permute.xlu0 %1311
      %1313 = vrot.lane.b32.xlu0 %v971, 16
      %v1314 = vpop.permute.xlu0 %1313
      %1315 = vrot.lane.b32.xlu0 %v976, 16
      %v1316 = vpop.permute.xlu0 %1315
      %1317 = vrot.lane.b32.xlu0 %v979, 16
      %v1318 = vpop.permute.xlu0 %1317
      %1319 = vrot.lane.b32.xlu0 %v984, 16
      %v1320 = vpop.permute.xlu0 %1319
      %1321 = vrot.lane.b32.xlu0 %v987, 16
      %v1322 = vpop.permute.xlu0 %1321
      %1323 = vrot.lane.b32.xlu0 %v992, 16
      %v1324 = vpop.permute.xlu0 %1323
      %1325 = vrot.lane.b32.xlu0 %v995, 16
      %v1326 = vpop.permute.xlu0 %1325
      %1327 = vrot.lane.b32.xlu0 %v1000, 16
      %v1328 = vpop.permute.xlu0 %1327
      %1329 = vrot.lane.b32.xlu0 %v1003, 16
      %v1330 = vpop.permute.xlu0 %1329
      %1331 = vrot.lane.b32.xlu0 %v1008, 16
      %v1332 = vpop.permute.xlu0 %1331
      %1333 = vrot.lane.b32.xlu0 %v1011, 16
      %v1334 = vpop.permute.xlu0 %1333
      %1367 = vrot.lane.b32.xlu0 %v1161, 24
      %v1368 = vpop.permute.xlu0 %1367
      %1369 = vrot.lane.b32.xlu0 %v1164, 24
      %v1370 = vpop.permute.xlu0 %1369
      %1371 = vrot.lane.b32.xlu0 %v1169, 24
      %v1372 = vpop.permute.xlu0 %1371
      %1373 = vrot.lane.b32.xlu0 %v1172, 24
      %v1374 = vpop.permute.xlu0 %1373
      %1375 = vrot.lane.b32.xlu0 %v1177, 24
      %v1376 = vpop.permute.xlu0 %1375
      %1377 = vrot.lane.b32.xlu0 %v1180, 24
      %v1378 = vpop.permute.xlu0 %1377
      %1379 = vrot.lane.b32.xlu0 %v1185, 24
      %v1380 = vpop.permute.xlu0 %1379
      %1381 = vrot.lane.b32.xlu0 %v1188, 24
      %v1382 = vpop.permute.xlu0 %1381
      %1383 = vrot.lane.b32.xlu0 %v1193, 24
      %v1384 = vpop.permute.xlu0 %1383
      %1385 = vrot.lane.b32.xlu0 %v1196, 24
      %v1386 = vpop.permute.xlu0 %1385
      %1387 = vrot.lane.b32.xlu0 %v1201, 24
      %v1388 = vpop.permute.xlu0 %1387
      %1389 = vrot.lane.b32.xlu0 %v1204, 24
      %v1390 = vpop.permute.xlu0 %1389
      %1391 = vrot.lane.b32.xlu0 %v1209, 24
      %v1392 = vpop.permute.xlu0 %1391
      %1393 = vrot.lane.b32.xlu0 %v1212, 24
      %v1394 = vpop.permute.xlu0 %1393
      %1395 = vrot.lane.b32.xlu0 %v1217, 24
      %v1396 = vpop.permute.xlu0 %1395
      %1397 = vrot.lane.b32.xlu0 %v1220, 24
      %v1398 = vpop.permute.xlu0 %1397
      %vm1415 = vcmask 64512
      %v1416 = vsel %vm1415, %v534, %v1240
      %v1417 = vsel %vm1415, %v537, %v1242
      %v1418 = vsel %vm1415, %v542, %v1244
      %v1419 = vsel %vm1415, %v545, %v1246
      %v1420 = vsel %vm1415, %v550, %v1248
      %v1421 = vsel %vm1415, %v553, %v1250
      %v1422 = vsel %vm1415, %v558, %v1252
      %v1423 = vsel %vm1415, %v561, %v1254
      %v1424 = vsel %vm1415, %v566, %v1256
      %v1425 = vsel %vm1415, %v569, %v1258
      %v1426 = vsel %vm1415, %v574, %v1260
      %v1427 = vsel %vm1415, %v577, %v1262
      %v1428 = vsel %vm1415, %v582, %v1264
      %v1429 = vsel %vm1415, %v585, %v1266
      %v1430 = vsel %vm1415, %v590, %v1268
      %v1431 = vsel %vm1415, %v593, %v1270
      %vm1432 = vcmask 130048
      %v1433 = vsel %vm1432, %v1416, %v1304
      %v1434 = vsel %vm1432, %v1417, %v1306
      %v1435 = vsel %vm1432, %v1418, %v1308
      %v1436 = vsel %vm1432, %v1419, %v1310
      %v1437 = vsel %vm1432, %v1420, %v1312
      %v1438 = vsel %vm1432, %v1421, %v1314
      %v1439 = vsel %vm1432, %v1422, %v1316
      %v1440 = vsel %vm1432, %v1423, %v1318
      %v1441 = vsel %vm1432, %v1424, %v1320
      %v1442 = vsel %vm1432, %v1425, %v1322
      %v1443 = vsel %vm1432, %v1426, %v1324
      %v1444 = vsel %vm1432, %v1427, %v1326
      %v1445 = vsel %vm1432, %v1428, %v1328
      %v1446 = vsel %vm1432, %v1429, %v1330
      %v1447 = vsel %vm1432, %v1430, %v1332
      %v1448 = vsel %vm1432, %v1431, %v1334
      %vm1449 = vcmask 195584
      %v1450 = vsel %vm1449, %v1433, %v1368
      %v1451 = vsel %vm1449, %v1434, %v1370
      %v1452 = vsel %vm1449, %v1435, %v1372
      %v1453 = vsel %vm1449, %v1436, %v1374
      %v1454 = vsel %vm1449, %v1437, %v1376
      %v1455 = vsel %vm1449, %v1438, %v1378
      %v1456 = vsel %vm1449, %v1439, %v1380
      %v1457 = vsel %vm1449, %v1440, %v1382
      %v1458 = vsel %vm1449, %v1441, %v1384
      %v1459 = vsel %vm1449, %v1442, %v1386
      %v1460 = vsel %vm1449, %v1443, %v1388
      %v1461 = vsel %vm1449, %v1444, %v1390
      %v1462 = vsel %vm1449, %v1445, %v1392
      %v1463 = vsel %vm1449, %v1446, %v1394
      %v1464 = vsel %vm1449, %v1447, %v1396
      %v1465 = vsel %vm1449, %v1448, %v1398
      %v1466 = vpack.c.bf16 %v1451, %v1450
      %v1467 = vpack.c.bf16 %v1453, %v1452
      %v1468 = vpack.c.bf16 %v1455, %v1454
      %v1469 = vpack.c.bf16 %v1457, %v1456
      %v1470 = vpack.c.bf16 %v1459, %v1458
      %v1471 = vpack.c.bf16 %v1461, %v1460
      %v1472 = vpack.c.bf16 %v1463, %v1462
      %v1473 = vpack.c.bf16 %v1465, %v1464
      %v1474 = vld [vmem:[%s2] sm:$0xf]
      %v1475 = vld [vmem:[%s2 + $0x4] sm:$0xf]
      %v1476 = vld [vmem:[%s2 + $0x8] sm:$0xf]
      %v1477 = vld [vmem:[%s2 + $0xc] sm:$0xf]
      %v1478 = vld [vmem:[%s3] sm:$0x1]
      %v1480 = vlaneseq
      %v1481 = vshrl.u32 %v1480, 7
      %v1482 = vsub.s32 0, %v1481
      %v1483 = vrot.slane %v1478, %v1482
      %v1489 = vunpack.c.l.b16 %v1474
      %v1490 = vunpack.c.l.b16 %v1475
      %v1491 = vunpack.c.l.b16 %v1476
      %v1492 = vunpack.c.l.b16 %v1477
      %v1493 = vpack.c.b16 %v1490, %v1489
      %v1494 = vpack.c.b16 %v1492, %v1491
      %vm1497 = vcmask 261120
      %v1499 = vsel %vm1497, %v1466, 0
      %v1502 = vsel %vm1497, %v1467, 0
      %v1505 = vsel %vm1497, %v1468, 0
      %v1508 = vsel %vm1497, %v1469, 0
      %v1511 = vsel %vm1497, %v1470, 0
      %v1514 = vsel %vm1497, %v1471, 0
      %v1517 = vsel %vm1497, %v1472, 0
      %v1520 = vsel %vm1497, %v1473, 0
      %1522 = vmatprep.subr.bf16.mxu0 0
      %1523 = vmatpush1.bf16.msra.mxu0 0
      %1524 = vmatprep.subr.bf16.mxu0 0
      %1525 = vmatpush1.bf16.msra.mxu0 0
      %1526 = vmatprep.subr.bf16.mxu0 0
      %1527 = vmatpush1.bf16.msra.mxu0 0
      %1528 = vmatprep.subr.bf16.mxu0 0
      %1529 = vmatpush1.bf16.msra.mxu0 0
      %1530 = vmatprep.subr.bf16.mxu0 0
      %1531 = vmatpush1.bf16.msra.mxu0 0
      %1532 = vmatprep.subr.bf16.mxu0 0
      %1533 = vmatpush1.bf16.msra.mxu0 0
      %1534 = vmatprep.subr.bf16.mxu0 0
      %1535 = vmatpush1.bf16.msra.mxu0 %v1494
      %1536 = vmatprep.subr.bf16.mxu0 0
      %1537 = vmatpush1.bf16.msra.mxu0 %v1493
      %1538 = vmatprep.subr.bf16.mxu0 0
      %1539 = vmatpush2.bf16.msra.mxu0 0
      %1540 = vmatprep.subr.bf16.mxu0 0
      %1541 = vmatpush2.bf16.msra.mxu0 0
      %1542 = vmatprep.subr.bf16.mxu0 0
      %1543 = vmatpush2.bf16.msra.mxu0 0
      %1544 = vmatprep.subr.bf16.mxu0 0
      %1545 = vmatpush2.bf16.msra.mxu0 0
      %1546 = vmatprep.subr.bf16.mxu0 0
      %1547 = vmatpush2.bf16.msra.mxu0 0
      %1548 = vmatprep.subr.bf16.mxu0 0
      %1549 = vmatpush2.bf16.msra.mxu0 0
      %1550 = vmatprep.subr.bf16.mxu0 0
      %1551 = vmatpush2.bf16.msra.mxu0 0
      %1552 = vmatprep.subr.bf16.mxu0 0
      %1553 = vmatpush2.bf16.msra.mxu0 0
      %1554 = vmatprep.mubr.bf16.mxu0 0
      %1555 = vmatmul.mubr.bf16.gmra.mxu0 %v1499
      %v1556 = vpop.f32.mrf.mxu0
      %v1557 = vadd.f32 %v1483, %v1556
      %v1558 = vpop.f32.mrf.mxu0
      %v1559 = vpop.f32.mrf.mxu0
      %v1560 = vadd.f32 %v1483, %v1559
      %v1561 = vpop.f32.mrf.mxu0
      %1562 = vmatprep.mubr.bf16.mxu0 0
      %1563 = vmatmul.mubr.bf16.gmra.mxu0 %v1502
      %v1564 = vpop.f32.mrf.mxu0
      %v1565 = vadd.f32 %v1483, %v1564
      %v1566 = vpop.f32.mrf.mxu0
      %v1567 = vpop.f32.mrf.mxu0
      %v1568 = vadd.f32 %v1483, %v1567
      %v1569 = vpop.f32.mrf.mxu0
      %1570 = vmatprep.mubr.bf16.mxu0 0
      %1571 = vmatmul.mubr.bf16.gmra.mxu0 %v1505
      %v1572 = vpop.f32.mrf.mxu0
      %v1573 = vadd.f32 %v1483, %v1572
      %v1574 = vpop.f32.mrf.mxu0
      %v1575 = vpop.f32.mrf.mxu0
      %v1576 = vadd.f32 %v1483, %v1575
      %v1577 = vpop.f32.mrf.mxu0
      %1578 = vmatprep.mubr.bf16.mxu0 0
      %1579 = vmatmul.mubr.bf16.gmra.mxu0 %v1508
      %v1580 = vpop.f32.mrf.mxu0
      %v1581 = vadd.f32 %v1483, %v1580
      %v1582 = vpop.f32.mrf.mxu0
      %v1583 = vpop.f32.mrf.mxu0
      %v1584 = vadd.f32 %v1483, %v1583
      %v1585 = vpop.f32.mrf.mxu0
      %1586 = vmatprep.mubr.bf16.mxu0 0
      %1587 = vmatmul.mubr.bf16.gmra.mxu0 %v1511
      %v1588 = vpop.f32.mrf.mxu0
      %v1589 = vadd.f32 %v1483, %v1588
      %v1590 = vpop.f32.mrf.mxu0
      %v1591 = vpop.f32.mrf.mxu0
      %v1592 = vadd.f32 %v1483, %v1591
      %v1593 = vpop.f32.mrf.mxu0
      %1594 = vmatprep.mubr.bf16.mxu0 0
      %1595 = vmatmul.mubr.bf16.gmra.mxu0 %v1514
      %v1596 = vpop.f32.mrf.mxu0
      %v1597 = vadd.f32 %v1483, %v1596
      %v1598 = vpop.f32.mrf.mxu0
      %v1599 = vpop.f32.mrf.mxu0
      %v1600 = vadd.f32 %v1483, %v1599
      %v1601 = vpop.f32.mrf.mxu0
      %1602 = vmatprep.mubr.bf16.mxu0 0
      %1603 = vmatmul.mubr.bf16.gmra.mxu0 %v1517
      %v1604 = vpop.f32.mrf.mxu0
      %v1605 = vadd.f32 %v1483, %v1604
      %v1606 = vpop.f32.mrf.mxu0
      %v1607 = vpop.f32.mrf.mxu0
      %v1608 = vadd.f32 %v1483, %v1607
      %v1609 = vpop.f32.mrf.mxu0
      %1610 = vmatprep.mubr.bf16.mxu0 0
      %1611 = vmatmul.mubr.bf16.gmra.mxu0 %v1520
      %v1612 = vpop.f32.mrf.mxu0
      %v1613 = vadd.f32 %v1483, %v1612
      %v1614 = vpop.f32.mrf.mxu0
      %v1615 = vpop.f32.mrf.mxu0
      %v1616 = vadd.f32 %v1483, %v1615
      %v1617 = vpop.f32.mrf.mxu0
      %1618 = vdwg.mxu0
      %v1619 = vmax.f32 %v1557, 0.0
      %v1620 = vmax.f32 %v1560, 0.0
      %v1621 = vmax.f32 %v1565, 0.0
      %v1622 = vmax.f32 %v1568, 0.0
      %v1623 = vmax.f32 %v1573, 0.0
      %v1624 = vmax.f32 %v1576, 0.0
      %v1625 = vmax.f32 %v1581, 0.0
      %v1626 = vmax.f32 %v1584, 0.0
      %v1627 = vmax.f32 %v1589, 0.0
      %v1628 = vmax.f32 %v1592, 0.0
      %v1629 = vmax.f32 %v1597, 0.0
      %v1630 = vmax.f32 %v1600, 0.0
      %v1631 = vmax.f32 %v1605, 0.0
      %v1632 = vmax.f32 %v1608, 0.0
      %v1633 = vmax.f32 %v1613, 0.0
      %v1634 = vmax.f32 %v1616, 0.0
      %v1635 = vpack.c.bf16 %v1620, %v1619
      %v1636 = vpack.c.bf16 %v1622, %v1621
      %v1637 = vpack.c.bf16 %v1624, %v1623
      %v1638 = vpack.c.bf16 %v1626, %v1625
      %v1639 = vpack.c.bf16 %v1628, %v1627
      %v1640 = vpack.c.bf16 %v1630, %v1629
      %v1641 = vpack.c.bf16 %v1632, %v1631
      %v1642 = vpack.c.bf16 %v1634, %v1633
      %v1643 = vld [vmem:[%s4] sm:$0xf]
      %v1644 = vld [vmem:[%s4 + $0x4] sm:$0xf]
      %v1645 = vld [vmem:[%s4 + $0x8] sm:$0xf]
      %v1646 = vld [vmem:[%s4 + $0xc] sm:$0xf]
      %v1647 = vld [vmem:[%s4 + $0x10] sm:$0xf]
      %v1648 = vld [vmem:[%s4 + $0x14] sm:$0xf]
      %v1649 = vld [vmem:[%s4 + $0x18] sm:$0xf]
      %v1650 = vld [vmem:[%s4 + $0x1c] sm:$0xf]
      %v1651 = vld [vmem:[%s5] sm:$0x1]
      %v1653 = vlaneseq
      %v1654 = vshrl.u32 %v1653, 7
      %v1655 = vsub.s32 0, %v1654
      %v1656 = vrot.slane %v1651, %v1655
      %v1666 = vunpack.c.l.b16 %v1643
      %v1667 = vunpack.c.l.b16 %v1644
      %v1668 = vunpack.c.l.b16 %v1645
      %v1669 = vunpack.c.l.b16 %v1646
      %v1670 = vunpack.c.l.b16 %v1647
      %v1671 = vunpack.c.l.b16 %v1648
      %v1672 = vunpack.c.l.b16 %v1649
      %v1673 = vunpack.c.l.b16 %v1650
      %v1674 = vpack.c.b16 %v1667, %v1666
      %v1675 = vpack.c.b16 %v1669, %v1668
      %v1676 = vpack.c.b16 %v1671, %v1670
      %v1677 = vpack.c.b16 %v1673, %v1672
      %vm1682 = vcmask 523264
      %v1684 = vsel %vm1682, %v1635, 0
      %v1687 = vsel %vm1682, %v1636, 0
      %v1690 = vsel %vm1682, %v1637, 0
      %v1693 = vsel %vm1682, %v1638, 0
      %v1696 = vsel %vm1682, %v1639, 0
      %v1699 = vsel %vm1682, %v1640, 0
      %v1702 = vsel %vm1682, %v1641, 0
      %v1705 = vsel %vm1682, %v1642, 0
      %1707 = vmatprep.subr.bf16.mxu0 0
      %1708 = vmatpush1.bf16.msra.mxu0 0
      %1709 = vmatprep.subr.bf16.mxu0 0
      %1710 = vmatpush1.bf16.msra.mxu0 0
      %1711 = vmatprep.subr.bf16.mxu0 0
      %1712 = vmatpush1.bf16.msra.mxu0 0
      %1713 = vmatprep.subr.bf16.mxu0 0
      %1714 = vmatpush1.bf16.msra.mxu0 0
      %1715 = vmatprep.subr.bf16.mxu0 0
      %1716 = vmatpush1.bf16.msra.mxu0 %v1677
      %1717 = vmatprep.subr.bf16.mxu0 0
      %1718 = vmatpush1.bf16.msra.mxu0 %v1676
      %1719 = vmatprep.subr.bf16.mxu0 0
      %1720 = vmatpush1.bf16.msra.mxu0 %v1675
      %1721 = vmatprep.subr.bf16.mxu0 0
      %1722 = vmatpush1.bf16.msra.mxu0 %v1674
      %1723 = vmatprep.subr.bf16.mxu0 0
      %1724 = vmatpush2.bf16.msra.mxu0 0
      %1725 = vmatprep.subr.bf16.mxu0 0
      %1726 = vmatpush2.bf16.msra.mxu0 0
      %1727 = vmatprep.subr.bf16.mxu0 0
      %1728 = vmatpush2.bf16.msra.mxu0 0
      %1729 = vmatprep.subr.bf16.mxu0 0
      %1730 = vmatpush2.bf16.msra.mxu0 0
      %1731 = vmatprep.subr.bf16.mxu0 0
      %1732 = vmatpush2.bf16.msra.mxu0 0
      %1733 = vmatprep.subr.bf16.mxu0 0
      %1734 = vmatpush2.bf16.msra.mxu0 0
      %1735 = vmatprep.subr.bf16.mxu0 0
      %1736 = vmatpush2.bf16.msra.mxu0 0
      %1737 = vmatprep.subr.bf16.mxu0 0
      %1738 = vmatpush2.bf16.msra.mxu0 0
      %1739 = vmatprep.mubr.bf16.mxu0 0
      %1740 = vmatmul.mubr.bf16.gmra.mxu0 %v1684
      %v1741 = vpop.f32.mrf.mxu0
      %v1742 = vadd.f32 %v1656, %v1741
      %v1743 = vpop.f32.mrf.mxu0
      %v1744 = vpop.f32.mrf.mxu0
      %v1745 = vadd.f32 %v1656, %v1744
      %v1746 = vpop.f32.mrf.mxu0
      %1747 = vmatprep.mubr.bf16.mxu0 0
      %1748 = vmatmul.mubr.bf16.gmra.mxu0 %v1687
      %v1749 = vpop.f32.mrf.mxu0
      %v1750 = vadd.f32 %v1656, %v1749
      %v1751 = vpop.f32.mrf.mxu0
      %v1752 = vpop.f32.mrf.mxu0
      %v1753 = vadd.f32 %v1656, %v1752
      %v1754 = vpop.f32.mrf.mxu0
      %1755 = vmatprep.mubr.bf16.mxu0 0
      %1756 = vmatmul.mubr.bf16.gmra.mxu0 %v1690
      %v1757 = vpop.f32.mrf.mxu0
      %v1758 = vadd.f32 %v1656, %v1757
      %v1759 = vpop.f32.mrf.mxu0
      %v1760 = vpop.f32.mrf.mxu0
      %v1761 = vadd.f32 %v1656, %v1760
      %v1762 = vpop.f32.mrf.mxu0
      %1763 = vmatprep.mubr.bf16.mxu0 0
      %1764 = vmatmul.mubr.bf16.gmra.mxu0 %v1693
      %v1765 = vpop.f32.mrf.mxu0
      %v1766 = vadd.f32 %v1656, %v1765
      %v1767 = vpop.f32.mrf.mxu0
      %v1768 = vpop.f32.mrf.mxu0
      %v1769 = vadd.f32 %v1656, %v1768
      %v1770 = vpop.f32.mrf.mxu0
      %1771 = vmatprep.mubr.bf16.mxu0 0
      %1772 = vmatmul.mubr.bf16.gmra.mxu0 %v1696
      %v1773 = vpop.f32.mrf.mxu0
      %v1774 = vadd.f32 %v1656, %v1773
      %v1775 = vpop.f32.mrf.mxu0
      %v1776 = vpop.f32.mrf.mxu0
      %v1777 = vadd.f32 %v1656, %v1776
      %v1778 = vpop.f32.mrf.mxu0
      %1779 = vmatprep.mubr.bf16.mxu0 0
      %1780 = vmatmul.mubr.bf16.gmra.mxu0 %v1699
      %v1781 = vpop.f32.mrf.mxu0
      %v1782 = vadd.f32 %v1656, %v1781
      %v1783 = vpop.f32.mrf.mxu0
      %v1784 = vpop.f32.mrf.mxu0
      %v1785 = vadd.f32 %v1656, %v1784
      %v1786 = vpop.f32.mrf.mxu0
      %1787 = vmatprep.mubr.bf16.mxu0 0
      %1788 = vmatmul.mubr.bf16.gmra.mxu0 %v1702
      %v1789 = vpop.f32.mrf.mxu0
      %v1790 = vadd.f32 %v1656, %v1789
      %v1791 = vpop.f32.mrf.mxu0
      %v1792 = vpop.f32.mrf.mxu0
      %v1793 = vadd.f32 %v1656, %v1792
      %v1794 = vpop.f32.mrf.mxu0
      %1795 = vmatprep.mubr.bf16.mxu0 0
      %1796 = vmatmul.mubr.bf16.gmra.mxu0 %v1705
      %v1797 = vpop.f32.mrf.mxu0
      %v1798 = vadd.f32 %v1656, %v1797
      %v1799 = vpop.f32.mrf.mxu0
      %v1800 = vpop.f32.mrf.mxu0
      %v1801 = vadd.f32 %v1656, %v1800
      %v1802 = vpop.f32.mrf.mxu0
      %1803 = vdwg.mxu0
      %v1804 = vmax.f32 %v1742, 0.0
      %v1805 = vmax.f32 %v1745, 0.0
      %v1806 = vmax.f32 %v1750, 0.0
      %v1807 = vmax.f32 %v1753, 0.0
      %v1808 = vmax.f32 %v1758, 0.0
      %v1809 = vmax.f32 %v1761, 0.0
      %v1810 = vmax.f32 %v1766, 0.0
      %v1811 = vmax.f32 %v1769, 0.0
      %v1812 = vmax.f32 %v1774, 0.0
      %v1813 = vmax.f32 %v1777, 0.0
      %v1814 = vmax.f32 %v1782, 0.0
      %v1815 = vmax.f32 %v1785, 0.0
      %v1816 = vmax.f32 %v1790, 0.0
      %v1817 = vmax.f32 %v1793, 0.0
      %v1818 = vmax.f32 %v1798, 0.0
      %v1819 = vmax.f32 %v1801, 0.0
      %v1820 = vld [vmem:[%s6] sm:$0x1]
      %v1822 = vlaneseq
      %v1823 = vshrl.u32 %v1822, 7
      %v1824 = vsub.s32 0, %v1823
      %v1825 = vrot.slane %v1820, %v1824
      %v1827 = vmul.f32 %v1804, %v1825
      %v1828 = vmul.f32 %v1805, %v1825
      %v1829 = vmul.f32 %v1806, %v1825
      %v1830 = vmul.f32 %v1807, %v1825
      %v1831 = vmul.f32 %v1808, %v1825
      %v1832 = vmul.f32 %v1809, %v1825
      %v1833 = vmul.f32 %v1810, %v1825
      %v1834 = vmul.f32 %v1811, %v1825
      %v1835 = vmul.f32 %v1812, %v1825
      %v1836 = vmul.f32 %v1813, %v1825
      %v1837 = vmul.f32 %v1814, %v1825
      %v1838 = vmul.f32 %v1815, %v1825
      %v1839 = vmul.f32 %v1816, %v1825
      %v1840 = vmul.f32 %v1817, %v1825
      %v1841 = vmul.f32 %v1818, %v1825
      %v1842 = vmul.f32 %v1819, %v1825
      %v1843 = vsel %vm1497, %v1827, 0.0
      %1844 = vadd.xlane.f32.xlu0 %v1843
      %v1845 = vpop.xlane.xlu0 %1844
      %v1846 = vsel %vm1497, %v1828, 0.0
      %1847 = vadd.xlane.f32.xlu0 %v1846
      %v1848 = vpop.xlane.xlu0 %1847
      %v1849 = vsel %vm1497, %v1829, 0.0
      %1850 = vadd.xlane.f32.xlu0 %v1849
      %v1851 = vpop.xlane.xlu0 %1850
      %v1852 = vsel %vm1497, %v1830, 0.0
      %1853 = vadd.xlane.f32.xlu0 %v1852
      %v1854 = vpop.xlane.xlu0 %1853
      %v1855 = vsel %vm1497, %v1831, 0.0
      %1856 = vadd.xlane.f32.xlu0 %v1855
      %v1857 = vpop.xlane.xlu0 %1856
      %v1858 = vsel %vm1497, %v1832, 0.0
      %1859 = vadd.xlane.f32.xlu0 %v1858
      %v1860 = vpop.xlane.xlu0 %1859
      %v1861 = vsel %vm1497, %v1833, 0.0
      %1862 = vadd.xlane.f32.xlu0 %v1861
      %v1863 = vpop.xlane.xlu0 %1862
      %v1864 = vsel %vm1497, %v1834, 0.0
      %1865 = vadd.xlane.f32.xlu0 %v1864
      %v1866 = vpop.xlane.xlu0 %1865
      %v1867 = vsel %vm1497, %v1835, 0.0
      %1868 = vadd.xlane.f32.xlu0 %v1867
      %v1869 = vpop.xlane.xlu0 %1868
      %v1870 = vsel %vm1497, %v1836, 0.0
      %1871 = vadd.xlane.f32.xlu0 %v1870
      %v1872 = vpop.xlane.xlu0 %1871
      %v1873 = vsel %vm1497, %v1837, 0.0
      %1874 = vadd.xlane.f32.xlu0 %v1873
      %v1875 = vpop.xlane.xlu0 %1874
      %v1876 = vsel %vm1497, %v1838, 0.0
      %1877 = vadd.xlane.f32.xlu0 %v1876
      %v1878 = vpop.xlane.xlu0 %1877
      %v1879 = vsel %vm1497, %v1839, 0.0
      %1880 = vadd.xlane.f32.xlu0 %v1879
      %v1881 = vpop.xlane.xlu0 %1880
      %v1882 = vsel %vm1497, %v1840, 0.0
      %1883 = vadd.xlane.f32.xlu0 %v1882
      %v1884 = vpop.xlane.xlu0 %1883
      %v1885 = vsel %vm1497, %v1841, 0.0
      %1886 = vadd.xlane.f32.xlu0 %v1885
      %v1887 = vpop.xlane.xlu0 %1886
      %v1888 = vsel %vm1497, %v1842, 0.0
      %1889 = vadd.xlane.f32.xlu0 %v1888
      %v1890 = vpop.xlane.xlu0 %1889
      %v1891 = vld [vmem:[#allocation2] sm:$0x1]
      %v1893 = vlaneseq
      %v1894 = vshrl.u32 %v1893, 7
      %v1895 = vsub.s32 0, %v1894
      %v1896 = vrot.slane %v1891, %v1895
      %v1898 = vadd.f32 %v1845, %v1896
      %v1899 = vadd.f32 %v1848, %v1896
      %v1900 = vadd.f32 %v1851, %v1896
      %v1901 = vadd.f32 %v1854, %v1896
      %v1902 = vadd.f32 %v1857, %v1896
      %v1903 = vadd.f32 %v1860, %v1896
      %v1904 = vadd.f32 %v1863, %v1896
      %v1905 = vadd.f32 %v1866, %v1896
      %v1906 = vadd.f32 %v1869, %v1896
      %v1907 = vadd.f32 %v1872, %v1896
      %v1908 = vadd.f32 %v1875, %v1896
      %v1909 = vadd.f32 %v1878, %v1896
      %v1910 = vadd.f32 %v1881, %v1896
      %v1911 = vadd.f32 %v1884, %v1896
      %v1912 = vadd.f32 %v1887, %v1896
      %v1913 = vadd.f32 %v1890, %v1896
      %v1914 = vxor.u32 %v1898, 2147483648
      %v1915 = vxor.u32 %v1899, 2147483648
      %v1916 = vxor.u32 %v1900, 2147483648
      %v1917 = vxor.u32 %v1901, 2147483648
      %v1918 = vxor.u32 %v1902, 2147483648
      %v1919 = vxor.u32 %v1903, 2147483648
      %v1920 = vxor.u32 %v1904, 2147483648
      %v1921 = vxor.u32 %v1905, 2147483648
      %v1922 = vxor.u32 %v1906, 2147483648
      %v1923 = vxor.u32 %v1907, 2147483648
      %v1924 = vxor.u32 %v1908, 2147483648
      %v1925 = vxor.u32 %v1909, 2147483648
      %v1926 = vxor.u32 %v1910, 2147483648
      %v1927 = vxor.u32 %v1911, 2147483648
      %v1928 = vxor.u32 %v1912, 2147483648
      %v1929 = vxor.u32 %v1913, 2147483648
      %v1930 = vmul.f32 %v1914, 1.442695
      %v1931 = vpow.pop %v1930
      %v1932 = vmul.f32 %v1915, 1.442695
      %v1933 = vpow.pop %v1932
      %v1934 = vmul.f32 %v1916, 1.442695
      %v1935 = vpow.pop %v1934
      %v1936 = vmul.f32 %v1917, 1.442695
      %v1937 = vpow.pop %v1936
      %v1938 = vmul.f32 %v1918, 1.442695
      %v1939 = vpow.pop %v1938
      %v1940 = vmul.f32 %v1919, 1.442695
      %v1941 = vpow.pop %v1940
      %v1942 = vmul.f32 %v1920, 1.442695
      %v1943 = vpow.pop %v1942
      %v1944 = vmul.f32 %v1921, 1.442695
      %v1945 = vpow.pop %v1944
      %v1946 = vmul.f32 %v1922, 1.442695
      %v1947 = vpow.pop %v1946
      %v1948 = vmul.f32 %v1923, 1.442695
      %v1949 = vpow.pop %v1948
      %v1950 = vmul.f32 %v1924, 1.442695
      %v1951 = vpow.pop %v1950
      %v1952 = vmul.f32 %v1925, 1.442695
      %v1953 = vpow.pop %v1952
      %v1954 = vmul.f32 %v1926, 1.442695
      %v1955 = vpow.pop %v1954
      %v1956 = vmul.f32 %v1927, 1.442695
      %v1957 = vpow.pop %v1956
      %v1958 = vmul.f32 %v1928, 1.442695
      %v1959 = vpow.pop %v1958
      %v1960 = vmul.f32 %v1929, 1.442695
      %v1961 = vpow.pop %v1960
      %v1962 = vadd.f32 %v1931, 1.0
      %v1963 = vadd.f32 %v1933, 1.0
      %v1964 = vadd.f32 %v1935, 1.0
      %v1965 = vadd.f32 %v1937, 1.0
      %v1966 = vadd.f32 %v1939, 1.0
      %v1967 = vadd.f32 %v1941, 1.0
      %v1968 = vadd.f32 %v1943, 1.0
      %v1969 = vadd.f32 %v1945, 1.0
      %v1970 = vadd.f32 %v1947, 1.0
      %v1971 = vadd.f32 %v1949, 1.0
      %v1972 = vadd.f32 %v1951, 1.0
      %v1973 = vadd.f32 %v1953, 1.0
      %v1974 = vadd.f32 %v1955, 1.0
      %v1975 = vadd.f32 %v1957, 1.0
      %v1976 = vadd.f32 %v1959, 1.0
      %v1977 = vadd.f32 %v1961, 1.0
      %v1978 = vrcp.pop %v1962
      %v1979 = vmul.f32 1.0, %v1978
      %v1980 = vrcp.pop %v1963
      %v1981 = vmul.f32 1.0, %v1980
      %v1982 = vrcp.pop %v1964
      %v1983 = vmul.f32 1.0, %v1982
      %v1984 = vrcp.pop %v1965
      %v1985 = vmul.f32 1.0, %v1984
      %v1986 = vrcp.pop %v1966
      %v1987 = vmul.f32 1.0, %v1986
      %v1988 = vrcp.pop %v1967
      %v1989 = vmul.f32 1.0, %v1988
      %v1990 = vrcp.pop %v1968
      %v1991 = vmul.f32 1.0, %v1990
      %v1992 = vrcp.pop %v1969
      %v1993 = vmul.f32 1.0, %v1992
      %v1994 = vrcp.pop %v1970
      %v1995 = vmul.f32 1.0, %v1994
      %v1996 = vrcp.pop %v1971
      %v1997 = vmul.f32 1.0, %v1996
      %v1998 = vrcp.pop %v1972
      %v1999 = vmul.f32 1.0, %v1998
      %v2000 = vrcp.pop %v1973
      %v2001 = vmul.f32 1.0, %v2000
      %v2002 = vrcp.pop %v1974
      %v2003 = vmul.f32 1.0, %v2002
      %v2004 = vrcp.pop %v1975
      %v2005 = vmul.f32 1.0, %v2004
      %v2006 = vrcp.pop %v1976
      %v2007 = vmul.f32 1.0, %v2006
      %v2008 = vrcp.pop %v1977
      %v2009 = vmul.f32 1.0, %v2008
      %vm2010 = vcmask 7168
      %2011 = vst.msk [vmem:[%s309] sm:$0xff] %vm2010, %v1979
      %2012 = vst.msk [vmem:[%s309 + $0x8] sm:$0xff] %vm2010, %v1981
      %2013 = vst.msk [vmem:[%s309 + $0x10] sm:$0xff] %vm2010, %v1983
      %2014 = vst.msk [vmem:[%s309 + $0x18] sm:$0xff] %vm2010, %v1985
      %2015 = vst.msk [vmem:[%s309 + $0x20] sm:$0xff] %vm2010, %v1987
      %2016 = vst.msk [vmem:[%s309 + $0x28] sm:$0xff] %vm2010, %v1989
      %2017 = vst.msk [vmem:[%s309 + $0x30] sm:$0xff] %vm2010, %v1991
      %2018 = vst.msk [vmem:[%s309 + $0x38] sm:$0xff] %vm2010, %v1993
      %2019 = vst.msk [vmem:[%s309 + $0x40] sm:$0xff] %vm2010, %v1995
      %2020 = vst.msk [vmem:[%s309 + $0x48] sm:$0xff] %vm2010, %v1997
      %2021 = vst.msk [vmem:[%s309 + $0x50] sm:$0xff] %vm2010, %v1999
      %2022 = vst.msk [vmem:[%s309 + $0x58] sm:$0xff] %vm2010, %v2001
      %2023 = vst.msk [vmem:[%s309 + $0x60] sm:$0xff] %vm2010, %v2003
      %2024 = vst.msk [vmem:[%s309 + $0x68] sm:$0xff] %vm2010, %v2005
      %2025 = vst.msk [vmem:[%s309 + $0x70] sm:$0xff] %vm2010, %v2007
      %2026 = vst.msk [vmem:[%s309 + $0x78] sm:$0xff] %vm2010, %v2009
      %s2027 = smul.u32 16, %s21
      %p2028 = scmp.lt.s32.totalorder %s2027, 31
      %s2029 = scalar_select %p2028, %s2027, 31
      %s2030 = smul.addr %s2029, 8
      %s2031 = scalar_lea.vmem %s8, %s2030
      // Predicated region
      $region53: #{tpu_custom_call.1} parent=51 // pred_check
        %p2032 = pneg %p212
      $region54: #{tpu_custom_call.1} parent=51 // pred_check_branch
        %2034 = sbr.rel (%p2032) target = $region56
      $region55: #{tpu_custom_call.1} parent=51 // pred_region
        %s2035 = smul.u32 16, %s21
      $region56: #{tpu_custom_call.1} parent=51 // pred_fallthru
        _
    $region52: #{tpu_custom_call.1} parent=5 // pred_fallthru
      _
    %p2036 = scmp.le.s32.totalorder 2, %s16
    // Predicated region
    $region57: #{tpu_custom_call.1} parent=5 // pred_check
      %p2037 = pneg %p2036
    $region58: #{tpu_custom_call.1} parent=5 // pred_check_branch
      %2039 = sbr.rel (%p2037) target = $region60
    $region59: #{tpu_custom_call.1} parent=5 // pred_region
      %s2040 = ssub.s32 %s16, 2
      // Predicated region
      $region61: #{tpu_custom_call.1} parent=59 // pred_check
        %p2041 = pneg %p218
      $region62: #{tpu_custom_call.1} parent=59 // pred_check_branch
        %2043 = sbr.rel (%p2041) target = $region64
      $region63: #{tpu_custom_call.1} parent=59 // pred_region
        %s2044 = smul.u32 16, %s22
        %p2045 = scmp.lt.s32.totalorder %s2044, 31
        %s2046 = scalar_select %p2045, %s2044, 31
        %s2047 = smul.addr %s2046, 8
        %s2048 = scalar_lea.vmem %s8, %s2047
      $region64: #{tpu_custom_call.1} parent=59 // pred_fallthru
        _
    $region60: #{tpu_custom_call.1} parent=5 // pred_fallthru
      _
  $region6: #{tpu_custom_call.1} parent=0 // loop_footer
    %s20 = sadd.s32 1, %s16
  $region7: #{tpu_custom_call.1} parent=0 // loop_footer_branch
    %15 = sbr.rel target = $region3
  $region8: #{tpu_custom_call.1} parent=0 // loop_exit
    _

</llo_original>
